<compile_context>
chip_gen: v6e
topology: v6e:2x2x1
jax: 0.10.0
libtpu: 0.0.40
codegen_flags: <defaults>
</compile_context>

<pallas_src>
import functools

import jax
import jax.numpy as jnp
from jax import lax
from jax.experimental import pallas as pl
from jax.experimental.pallas import tpu as pltpu


def make_divisible(value, divisor, min_value=None, rounding_down_protect=True):
    if min_value is None:
        min_value = divisor
    new_value = max(min_value, int(value + divisor / 2) // divisor * divisor)
    if rounding_down_protect and new_value < 0.9 * value:
        new_value += divisor
    return int(new_value)


def bn_fold(gamma, beta, mean, var, eps=1e-3):
    """Fold eval-mode BatchNorm into per-channel scale / bias."""
    scale = gamma / jnp.sqrt(var + eps)
    bias = beta - mean * scale
    return scale, bias


# ---------------------------------------------------------------------------
# Fused kernel (channels-major):
#   expand 1x1 (MXU) -> kxk depthwise (VPU, per-tap lane-offset reads from a
#   VMEM padded-rows scratch) -> project 1x1 (MXU) -> + residual.
# One grid step == one batch image; all intermediates stay in VMEM / vregs.
# ---------------------------------------------------------------------------
def _uib_fused_kernel(x_ref, we_ref, be_ref, wd_ref, bd_ref, wp_ref, bp_ref,
                      o_ref, pad_ref, *, H, W, k, guard):
    HW = H * W
    p = k // 2
    Cexp = we_ref.shape[0]
    base = guard + p * W          # lane offset of the interior (128-aligned by construction)

    x = x_ref[0]                  # (Cin, HW), channels-major (also the residual)

    # ---- 1x1 expand conv (folded BN) + ReLU --------------------------------
    h = jnp.dot(we_ref[...], x, preferred_element_type=jnp.float32)   # (Cexp, HW)
    h = jnp.maximum(h + be_ref[...], 0.0)

    # ---- stage into the padded-rows scratch --------------------------------
    # Flat lane layout per channel: [guard | p zero rows | H data rows | p zero rows | tail].
    # Row stride is W (dense); horizontal SAME padding is virtual (column masks below),
    # so only the two vertical strips are zeroed (every step -> megacore-safe).
    pad_ref[:, guard:guard + p * W] = jnp.zeros((Cexp, p * W), jnp.float32)
    pad_ref[:, base + HW:base + HW + p * W] = jnp.zeros((Cexp, p * W), jnp.float32)
    pad_ref[:, base:base + HW] = h                                     # lane-aligned dense store

    # Column index within each image row (for masking row-boundary wrap of the dx taps).
    lane = lax.broadcasted_iota(jnp.int32, (1, HW), 1)
    col = (lane & (W - 1)) if (W & (W - 1)) == 0 else (lane % W)

    # ---- k x k depthwise conv (folded BN) + ReLU ---------------------------
    acc = jnp.zeros((Cexp, HW), jnp.float32)
    for dx in range(k):
        dxo = dx - p
        sub = jnp.zeros((Cexp, HW), jnp.float32)
        for dy in range(k):
            start = guard + dy * W + dxo
            tap = pad_ref[:, start:start + HW]                 # lane-offset read from scratch ref
            w_tap = wd_ref[:, dy * k + dx:dy * k + dx + 1]     # (Cexp, 1) -> lane broadcast
            sub = sub + w_tap * tap
        if dxo < 0:        # left taps: kill x < -dxo (would wrap to previous row)
            sub = jnp.where(col >= -dxo, sub, 0.0)
        elif dxo > 0:      # right taps: kill x >= W - dxo (would wrap to next row)
            sub = jnp.where(col < W - dxo, sub, 0.0)
        acc = acc + sub
    d = jnp.maximum(acc + bd_ref[...], 0.0)                    # (Cexp, HW)

    # ---- 1x1 project conv (folded BN) + residual ---------------------------
    out = jnp.dot(wp_ref[...], d, preferred_element_type=jnp.float32)  # (Cout, HW)
    out = out + bp_ref[...] + x                                # residual (Cin == Cout, stride == 1)
    o_ref[...] = out[None].astype(o_ref.dtype)


def uib_forward_pallas(x_nchw, params, *, kdw=3):
    N, Cin, H, W = x_nchw.shape
    HW = H * W
    Cexp = params["w_exp"].shape[1]
    Cout = params["w_proj"].shape[1]
    p = kdw // 2
    # Residual path (as configured: use_residual=True, stride=1, Cin==Cout).
    assert Cin == Cout, "residual path requires in_channels == out_channels"

    # Guard lanes: keeps the most-negative tap offset in-bounds AND makes the
    # interior store lane-aligned (guard + p*W is a multiple of 128).
    guard = (-(p * W)) % 128
    if guard < p:
        guard += 128
    pad_len = guard + (H + 2 * p) * W + p
    pad_len = ((pad_len + 127) // 128) * 128

    # Fold eval-mode BN scales into the conv weights; channels-major weight layouts.
    w_expT = (params["w_exp"] * params["s_exp"][None, :]).T                 # (Cexp, Cin)
    b_exp = params["b_exp"].reshape(Cexp, 1)
    w_dw_f = params["w_dw"] * params["s_dw"][None, None, :]                 # (k, k, Cexp)
    w_dwT = w_dw_f.reshape(kdw * kdw, Cexp).T                               # (Cexp, k*k)
    b_dw = params["b_dw"].reshape(Cexp, 1)
    w_projT = (params["w_proj"] * params["s_proj"][None, :]).T              # (Cout, Cexp)
    b_proj = params["b_proj"].reshape(Cout, 1)

    x_chw = x_nchw.reshape(N, Cin, HW)      # free reshape; no transposes anywhere

    out = pl.pallas_call(
        functools.partial(_uib_fused_kernel, H=H, W=W, k=kdw, guard=guard),
        out_shape=jax.ShapeDtypeStruct((N, Cout, HW), jnp.float32),
        grid_spec=pltpu.PrefetchScalarGridSpec(
            num_scalar_prefetch=0,
            grid=(N,),
            in_specs=[
                pl.BlockSpec((1, Cin, HW), lambda n: (n, 0, 0)),            # x (matmul rhs + residual)
                pl.BlockSpec((Cexp, Cin), lambda n: (0, 0)),                # w_exp^T (scale folded)
                pl.BlockSpec((Cexp, 1), lambda n: (0, 0)),                  # b_exp
                pl.BlockSpec((Cexp, kdw * kdw), lambda n: (0, 0)),          # w_dw (scale folded)
                pl.BlockSpec((Cexp, 1), lambda n: (0, 0)),                  # b_dw
                pl.BlockSpec((Cout, Cexp), lambda n: (0, 0)),               # w_proj^T (scale folded)
                pl.BlockSpec((Cout, 1), lambda n: (0, 0)),                  # b_proj
            ],
            out_specs=pl.BlockSpec((1, Cout, HW), lambda n: (n, 0, 0)),
            scratch_shapes=[
                pltpu.VMEM((Cexp, pad_len), jnp.float32),                   # padded-rows halo
            ],
        ),
        compiler_params=pltpu.CompilerParams(dimension_semantics=("parallel",)),
    )(x_chw, w_expT, b_exp, w_dwT, b_dw, w_projT, b_proj)

    return out.reshape(N, Cout, H, W)


# ---------------------------------------------------------------------------
# Pure-JAX reference (lax conv), same semantics, for verification.
# ---------------------------------------------------------------------------
def uib_forward_ref(x_nchw, params, *, kdw=3):
    Cexp = params["w_exp"].shape[1]
    Cout = params["w_proj"].shape[1]
    w1 = params["w_exp"].T.reshape(Cexp, -1, 1, 1)                     # OIHW
    wdw = jnp.transpose(params["w_dw"], (2, 0, 1))[:, None, :, :]      # (Cexp,1,k,k)
    w2 = params["w_proj"].T.reshape(Cout, Cexp, 1, 1)

    dn = ("NCHW", "OIHW", "NCHW")
    y = lax.conv_general_dilated(x_nchw, w1, (1, 1), "VALID", dimension_numbers=dn)
    y = y * params["s_exp"][None, :, None, None] + params["b_exp"][None, :, None, None]
    y = jnp.maximum(y, 0.0)

    p = kdw // 2
    y = lax.conv_general_dilated(y, wdw, (1, 1), ((p, p), (p, p)),
                                 dimension_numbers=dn, feature_group_count=Cexp)
    y = y * params["s_dw"][None, :, None, None] + params["b_dw"][None, :, None, None]
    y = jnp.maximum(y, 0.0)

    y = lax.conv_general_dilated(y, w2, (1, 1), "VALID", dimension_numbers=dn)
    y = y * params["s_proj"][None, :, None, None] + params["b_proj"][None, :, None, None]
    return y + x_nchw


if __name__ == "__main__":
    # Module config: in=out=16, expand_ratio=4, stride=1, middle_dw_kernel=3,
    # start/end dw disabled, use_residual=True, eval mode.
    N, Cin, H, W = 2, 16, 16, 16
    Cout = 16
    expand_ratio = 4.0
    kdw = 3
    Cexp = make_divisible(Cin * expand_ratio, 8)
    eps = 1e-3  # normal_config {'type': 'BN', 'eps': 0.001}

    key = jax.random.PRNGKey(0)
    keys = jax.random.split(key, 16)

    # Deterministic synthetic parameters (eval-mode BN folded to scale/bias).
    w_exp = jax.random.normal(keys[0], (Cin, Cexp), jnp.float32) * 0.1
    g1 = 1.0 + 0.1 * jax.random.normal(keys[1], (Cexp,), jnp.float32)
    b1 = 0.1 * jax.random.normal(keys[2], (Cexp,), jnp.float32)
    m1 = 0.1 * jax.random.normal(keys[3], (Cexp,), jnp.float32)
    v1 = 1.0 + 0.1 * jax.random.uniform(keys[4], (Cexp,), jnp.float32)
    s_exp, bias_exp = bn_fold(g1, b1, m1, v1, eps)

    w_dw = jax.random.normal(keys[5], (kdw, kdw, Cexp), jnp.float32) * 0.1
    g2 = 1.0 + 0.1 * jax.random.normal(keys[6], (Cexp,), jnp.float32)
    b2 = 0.1 * jax.random.normal(keys[7], (Cexp,), jnp.float32)
    m2 = 0.1 * jax.random.normal(keys[8], (Cexp,), jnp.float32)
    v2 = 1.0 + 0.1 * jax.random.uniform(keys[9], (Cexp,), jnp.float32)
    s_dw, bias_dw = bn_fold(g2, b2, m2, v2, eps)

    w_proj = jax.random.normal(keys[10], (Cexp, Cout), jnp.float32) * 0.1
    g3 = 1.0 + 0.1 * jax.random.normal(keys[11], (Cout,), jnp.float32)
    b3 = 0.1 * jax.random.normal(keys[12], (Cout,), jnp.float32)
    m3 = 0.1 * jax.random.normal(keys[13], (Cout,), jnp.float32)
    v3 = 1.0 + 0.1 * jax.random.uniform(keys[14], (Cout,), jnp.float32)
    s_proj, bias_proj = bn_fold(g3, b3, m3, v3, eps)

    params = dict(w_exp=w_exp, s_exp=s_exp, b_exp=bias_exp,
                  w_dw=w_dw, s_dw=s_dw, b_dw=bias_dw,
                  w_proj=w_proj, s_proj=s_proj, b_proj=bias_proj)

    x = jax.random.normal(keys[15], (N, Cin, H, W), jnp.float32)

    fwd = jax.jit(functools.partial(uib_forward_pallas, kdw=kdw))
    out = jax.block_until_ready(fwd(x, params))
    ref = jax.block_until_ready(uib_forward_ref(x, params, kdw=kdw))

    assert out.shape == (N, Cout, H, W), out.shape
    assert jnp.allclose(out, ref, atol=1e-4, rtol=1e-4), float(jnp.max(jnp.abs(out - ref)))

    print("KERNEL_OK")
</pallas_src>

<mosaic_0001>
module attributes {stable_mosaic.version = 11 : i64} {
  func.func @_uib_fused_kernel(%arg0: i32, %arg1: memref<1x16x256xf32, #tpu.memory_space<vmem>>, %arg2: memref<64x16xf32, #tpu.memory_space<vmem>>, %arg3: memref<64x1xf32, #tpu.memory_space<vmem>>, %arg4: memref<64x9xf32, #tpu.memory_space<vmem>>, %arg5: memref<64x1xf32, #tpu.memory_space<vmem>>, %arg6: memref<16x64xf32, #tpu.memory_space<vmem>>, %arg7: memref<16x1xf32, #tpu.memory_space<vmem>>, %arg8: memref<1x16x256xf32, #tpu.memory_space<vmem>>, %arg9: memref<64x512xf32, #tpu.memory_space<vmem>>) attributes {dimension_semantics = [#tpu.dimension_semantics<parallel>], iteration_bounds = array<i64: 2>, scalar_prefetch = 0 : i64, scratch_operands = 1 : i64, tpu.core_type = #tpu.core_type<tc>, window_params = [{transform_indices = @transform_0, window_bounds = array<i64: 1, 16, 256>}, {pipeline_mode = #tpu.pipeline_mode<synchronous>, transform_indices = @transform_1, window_bounds = array<i64: 64, 16>}, {pipeline_mode = #tpu.pipeline_mode<synchronous>, transform_indices = @transform_2, window_bounds = array<i64: 64, 1>}, {pipeline_mode = #tpu.pipeline_mode<synchronous>, transform_indices = @transform_3, window_bounds = array<i64: 64, 9>}, {pipeline_mode = #tpu.pipeline_mode<synchronous>, transform_indices = @transform_4, window_bounds = array<i64: 64, 1>}, {pipeline_mode = #tpu.pipeline_mode<synchronous>, transform_indices = @transform_5, window_bounds = array<i64: 16, 64>}, {pipeline_mode = #tpu.pipeline_mode<synchronous>, transform_indices = @transform_6, window_bounds = array<i64: 16, 1>}, {transform_indices = @transform_7, window_bounds = array<i64: 1, 16, 256>}]} {
    %c0 = arith.constant 0 : index
    %c0_0 = arith.constant 0 : index
    %c0_1 = arith.constant 0 : index
    %0 = vector.load %arg1[%c0, %c0_0, %c0_1] : memref<1x16x256xf32, #tpu.memory_space<vmem>>, vector<1x16x256xf32>
    %1 = vector.shape_cast %0 : vector<1x16x256xf32> to vector<16x256xf32>
    %c0_2 = arith.constant 0 : index
    %c0_3 = arith.constant 0 : index
    %2 = vector.load %arg2[%c0_2, %c0_3] : memref<64x16xf32, #tpu.memory_space<vmem>>, vector<64x16xf32>
    %cst = arith.constant dense<0.000000e+00> : vector<64x256xf32>
    %3 = tpu.matmul %2, %1, %cst {dimension_numbers = #tpu.dot_dimension_numbers<[1], [0], [0], [1], [0, 0, 1, 1], [], []>} : vector<64x16xf32>, vector<16x256xf32>, vector<64x256xf32> -> vector<64x256xf32>
    %c0_4 = arith.constant 0 : index
    %c0_5 = arith.constant 0 : index
    %4 = vector.load %arg3[%c0_4, %c0_5] : memref<64x1xf32, #tpu.memory_space<vmem>>, vector<64x1xf32>
    %5 = vector.broadcast %4 : vector<64x1xf32> to vector<64x256xf32>
    %6 = arith.addf %3, %5 : vector<64x256xf32>
    %cst_6 = arith.constant 0.000000e+00 : f32
    %7 = vector.broadcast %cst_6 : f32 to vector<64x256xf32>
    %8 = arith.maximumf %6, %7 : vector<64x256xf32>
    %cst_7 = arith.constant 0.000000e+00 : f32
    %9 = vector.broadcast %cst_7 : f32 to vector<64x16xf32>
    %c0_8 = arith.constant 0 : index
    %c112 = arith.constant 112 : index
    %10 = vector.load %arg9[%c0_8, %c112] : memref<64x512xf32, #tpu.memory_space<vmem>>, vector<64x16xf32>
    tpu.vector_store %arg9[%c0_8, %c112], %9 {strides = array<i32>} : memref<64x512xf32, #tpu.memory_space<vmem>>, vector<64x16xf32>,
    %cst_9 = arith.constant 0.000000e+00 : f32
    %11 = vector.broadcast %cst_9 : f32 to vector<64x16xf32>
    %c0_10 = arith.constant 0 : index
    %c384 = arith.constant 384 : index
    %12 = vector.load %arg9[%c0_10, %c384] : memref<64x512xf32, #tpu.memory_space<vmem>>, vector<64x16xf32>
    tpu.vector_store %arg9[%c0_10, %c384], %11 {strides = array<i32>} : memref<64x512xf32, #tpu.memory_space<vmem>>, vector<64x16xf32>,
    %c0_11 = arith.constant 0 : index
    %c128 = arith.constant 128 : index
    %13 = vector.load %arg9[%c0_11, %c128] : memref<64x512xf32, #tpu.memory_space<vmem>>, vector<64x256xf32>
    tpu.vector_store %arg9[%c0_11, %c128], %8 {strides = array<i32>} : memref<64x512xf32, #tpu.memory_space<vmem>>, vector<64x256xf32>,
    %14 = tpu.iota {dimensions = array<i32: 1>} : vector<1x256xi32>
    %c15_i32 = arith.constant 15 : i32
    %15 = vector.broadcast %c15_i32 : i32 to vector<1x256xi32>
    %16 = arith.andi %14, %15 : vector<1x256xi32>
    %cst_12 = arith.constant 0.000000e+00 : f32
    %17 = vector.broadcast %cst_12 : f32 to vector<64x256xf32>
    %cst_13 = arith.constant 0.000000e+00 : f32
    %18 = vector.broadcast %cst_13 : f32 to vector<64x256xf32>
    %c0_14 = arith.constant 0 : index
    %c111 = arith.constant 111 : index
    %19 = vector.load %arg9[%c0_14, %c111] : memref<64x512xf32, #tpu.memory_space<vmem>>, vector<64x256xf32>
    %c0_15 = arith.constant 0 : index
    %c0_16 = arith.constant 0 : index
    %20 = vector.load %arg4[%c0_15, %c0_16] : memref<64x9xf32, #tpu.memory_space<vmem>>, vector<64x1xf32>
    %21 = vector.broadcast %20 : vector<64x1xf32> to vector<64x256xf32>
    %22 = arith.mulf %21, %19 : vector<64x256xf32>
    %23 = arith.addf %18, %22 : vector<64x256xf32>
    %c0_17 = arith.constant 0 : index
    %c127 = arith.constant 127 : index
    %24 = vector.load %arg9[%c0_17, %c127] : memref<64x512xf32, #tpu.memory_space<vmem>>, vector<64x256xf32>
    %c0_18 = arith.constant 0 : index
    %c3 = arith.constant 3 : index
    %25 = vector.load %arg4[%c0_18, %c3] : memref<64x9xf32, #tpu.memory_space<vmem>>, vector<64x1xf32>
    %26 = vector.broadcast %25 : vector<64x1xf32> to vector<64x256xf32>
    %27 = arith.mulf %26, %24 : vector<64x256xf32>
    %28 = arith.addf %23, %27 : vector<64x256xf32>
    %c0_19 = arith.constant 0 : index
    %c143 = arith.constant 143 : index
    %29 = vector.load %arg9[%c0_19, %c143] : memref<64x512xf32, #tpu.memory_space<vmem>>, vector<64x256xf32>
    %c0_20 = arith.constant 0 : index
    %c6 = arith.constant 6 : index
    %30 = vector.load %arg4[%c0_20, %c6] : memref<64x9xf32, #tpu.memory_space<vmem>>, vector<64x1xf32>
    %31 = vector.broadcast %30 : vector<64x1xf32> to vector<64x256xf32>
    %32 = arith.mulf %31, %29 : vector<64x256xf32>
    %33 = arith.addf %28, %32 : vector<64x256xf32>
    %c1_i32 = arith.constant 1 : i32
    %34 = vector.broadcast %c1_i32 : i32 to vector<1x256xi32>
    %35 = arith.cmpi sge, %16, %34 : vector<1x256xi32>
    %cst_21 = arith.constant 0.000000e+00 : f32
    %36 = vector.shape_cast %35 : vector<1x256xi1> to vector<1x256xi1>
    %37 = vector.broadcast %36 : vector<1x256xi1> to vector<64x256xi1>
    %38 = vector.broadcast %cst_21 : f32 to vector<64x256xf32>
    %39 = arith.select %37, %33, %38 : vector<64x256xi1>, vector<64x256xf32>
    %40 = arith.addf %17, %39 : vector<64x256xf32>
    %cst_22 = arith.constant 0.000000e+00 : f32
    %41 = vector.broadcast %cst_22 : f32 to vector<64x256xf32>
    %c0_23 = arith.constant 0 : index
    %c112_24 = arith.constant 112 : index
    %42 = vector.load %arg9[%c0_23, %c112_24] : memref<64x512xf32, #tpu.memory_space<vmem>>, vector<64x256xf32>
    %c0_25 = arith.constant 0 : index
    %c1 = arith.constant 1 : index
    %43 = vector.load %arg4[%c0_25, %c1] : memref<64x9xf32, #tpu.memory_space<vmem>>, vector<64x1xf32>
    %44 = vector.broadcast %43 : vector<64x1xf32> to vector<64x256xf32>
    %45 = arith.mulf %44, %42 : vector<64x256xf32>
    %46 = arith.addf %41, %45 : vector<64x256xf32>
    %c0_26 = arith.constant 0 : index
    %c128_27 = arith.constant 128 : index
    %47 = vector.load %arg9[%c0_26, %c128_27] : memref<64x512xf32, #tpu.memory_space<vmem>>, vector<64x256xf32>
    %c0_28 = arith.constant 0 : index
    %c4 = arith.constant 4 : index
    %48 = vector.load %arg4[%c0_28, %c4] : memref<64x9xf32, #tpu.memory_space<vmem>>, vector<64x1xf32>
    %49 = vector.broadcast %48 : vector<64x1xf32> to vector<64x256xf32>
    %50 = arith.mulf %49, %47 : vector<64x256xf32>
    %51 = arith.addf %46, %50 : vector<64x256xf32>
    %c0_29 = arith.constant 0 : index
    %c144 = arith.constant 144 : index
    %52 = vector.load %arg9[%c0_29, %c144] : memref<64x512xf32, #tpu.memory_space<vmem>>, vector<64x256xf32>
    %c0_30 = arith.constant 0 : index
    %c7 = arith.constant 7 : index
    %53 = vector.load %arg4[%c0_30, %c7] : memref<64x9xf32, #tpu.memory_space<vmem>>, vector<64x1xf32>
    %54 = vector.broadcast %53 : vector<64x1xf32> to vector<64x256xf32>
    %55 = arith.mulf %54, %52 : vector<64x256xf32>
    %56 = arith.addf %51, %55 : vector<64x256xf32>
    %57 = arith.addf %40, %56 : vector<64x256xf32>
    %cst_31 = arith.constant 0.000000e+00 : f32
    %58 = vector.broadcast %cst_31 : f32 to vector<64x256xf32>
    %c0_32 = arith.constant 0 : index
    %c113 = arith.constant 113 : index
    %59 = vector.load %arg9[%c0_32, %c113] : memref<64x512xf32, #tpu.memory_space<vmem>>, vector<64x256xf32>
    %c0_33 = arith.constant 0 : index
    %c2 = arith.constant 2 : index
    %60 = vector.load %arg4[%c0_33, %c2] : memref<64x9xf32, #tpu.memory_space<vmem>>, vector<64x1xf32>
    %61 = vector.broadcast %60 : vector<64x1xf32> to vector<64x256xf32>
    %62 = arith.mulf %61, %59 : vector<64x256xf32>
    %63 = arith.addf %58, %62 : vector<64x256xf32>
    %c0_34 = arith.constant 0 : index
    %c129 = arith.constant 129 : index
    %64 = vector.load %arg9[%c0_34, %c129] : memref<64x512xf32, #tpu.memory_space<vmem>>, vector<64x256xf32>
    %c0_35 = arith.constant 0 : index
    %c5 = arith.constant 5 : index
    %65 = vector.load %arg4[%c0_35, %c5] : memref<64x9xf32, #tpu.memory_space<vmem>>, vector<64x1xf32>
    %66 = vector.broadcast %65 : vector<64x1xf32> to vector<64x256xf32>
    %67 = arith.mulf %66, %64 : vector<64x256xf32>
    %68 = arith.addf %63, %67 : vector<64x256xf32>
    %c0_36 = arith.constant 0 : index
    %c145 = arith.constant 145 : index
    %69 = vector.load %arg9[%c0_36, %c145] : memref<64x512xf32, #tpu.memory_space<vmem>>, vector<64x256xf32>
    %c0_37 = arith.constant 0 : index
    %c8 = arith.constant 8 : index
    %70 = vector.load %arg4[%c0_37, %c8] : memref<64x9xf32, #tpu.memory_space<vmem>>, vector<64x1xf32>
    %71 = vector.broadcast %70 : vector<64x1xf32> to vector<64x256xf32>
    %72 = arith.mulf %71, %69 : vector<64x256xf32>
    %73 = arith.addf %68, %72 : vector<64x256xf32>
    %c15_i32_38 = arith.constant 15 : i32
    %74 = vector.broadcast %c15_i32_38 : i32 to vector<1x256xi32>
    %75 = arith.cmpi slt, %16, %74 : vector<1x256xi32>
    %cst_39 = arith.constant 0.000000e+00 : f32
    %76 = vector.shape_cast %75 : vector<1x256xi1> to vector<1x256xi1>
    %77 = vector.broadcast %76 : vector<1x256xi1> to vector<64x256xi1>
    %78 = vector.broadcast %cst_39 : f32 to vector<64x256xf32>
    %79 = arith.select %77, %73, %78 : vector<64x256xi1>, vector<64x256xf32>
    %80 = arith.addf %57, %79 : vector<64x256xf32>
    %c0_40 = arith.constant 0 : index
    %c0_41 = arith.constant 0 : index
    %81 = vector.load %arg5[%c0_40, %c0_41] : memref<64x1xf32, #tpu.memory_space<vmem>>, vector<64x1xf32>
    %82 = vector.broadcast %81 : vector<64x1xf32> to vector<64x256xf32>
    %83 = arith.addf %80, %82 : vector<64x256xf32>
    %cst_42 = arith.constant 0.000000e+00 : f32
    %84 = vector.broadcast %cst_42 : f32 to vector<64x256xf32>
    %85 = arith.maximumf %83, %84 : vector<64x256xf32>
    %c0_43 = arith.constant 0 : index
    %c0_44 = arith.constant 0 : index
    %86 = vector.load %arg6[%c0_43, %c0_44] : memref<16x64xf32, #tpu.memory_space<vmem>>, vector<16x64xf32>
    %cst_45 = arith.constant dense<0.000000e+00> : vector<16x256xf32>
    %87 = tpu.matmul %86, %85, %cst_45 {dimension_numbers = #tpu.dot_dimension_numbers<[1], [0], [0], [1], [0, 0, 1, 1], [], []>} : vector<16x64xf32>, vector<64x256xf32>, vector<16x256xf32> -> vector<16x256xf32>
    %c0_46 = arith.constant 0 : index
    %c0_47 = arith.constant 0 : index
    %88 = vector.load %arg7[%c0_46, %c0_47] : memref<16x1xf32, #tpu.memory_space<vmem>>, vector<16x1xf32>
    %89 = vector.broadcast %88 : vector<16x1xf32> to vector<16x256xf32>
    %90 = arith.addf %87, %89 : vector<16x256xf32>
    %91 = arith.addf %90, %1 : vector<16x256xf32>
    %92 = vector.shape_cast %91 : vector<16x256xf32> to vector<1x16x256xf32>
    %c0_48 = arith.constant 0 : index
    %c0_49 = arith.constant 0 : index
    %c0_50 = arith.constant 0 : index
    %93 = vector.load %arg8[%c0_48, %c0_49, %c0_50] : memref<1x16x256xf32, #tpu.memory_space<vmem>>, vector<1x16x256xf32>
    tpu.vector_store %arg8[%c0_48, %c0_49, %c0_50], %92 {strides = array<i32>} : memref<1x16x256xf32, #tpu.memory_space<vmem>>, vector<1x16x256xf32>,
    return
  }
  func.func @transform_0(%arg0: i32) -> (i32, i32, i32) {
    %c0_i32 = arith.constant 0 : i32
    %c0_i32_0 = arith.constant 0 : i32
    %c0_i32_1 = arith.constant 0 : i32
    return %arg0, %c0_i32, %c0_i32_0 : i32, i32, i32
  }
  func.func @transform_1(%arg0: i32) -> (i32, i32) {
    %c0_i32 = arith.constant 0 : i32
    %c0_i32_0 = arith.constant 0 : i32
    %c0_i32_1 = arith.constant 0 : i32
    return %c0_i32, %c0_i32_0 : i32, i32
  }
  func.func @transform_2(%arg0: i32) -> (i32, i32) {
    %c0_i32 = arith.constant 0 : i32
    %c0_i32_0 = arith.constant 0 : i32
    %c0_i32_1 = arith.constant 0 : i32
    return %c0_i32, %c0_i32_0 : i32, i32
  }
  func.func @transform_3(%arg0: i32) -> (i32, i32) {
    %c0_i32 = arith.constant 0 : i32
    %c0_i32_0 = arith.constant 0 : i32
    %c0_i32_1 = arith.constant 0 : i32
    return %c0_i32, %c0_i32_0 : i32, i32
  }
  func.func @transform_4(%arg0: i32) -> (i32, i32) {
    %c0_i32 = arith.constant 0 : i32
    %c0_i32_0 = arith.constant 0 : i32
    %c0_i32_1 = arith.constant 0 : i32
    return %c0_i32, %c0_i32_0 : i32, i32
  }
  func.func @transform_5(%arg0: i32) -> (i32, i32) {
    %c0_i32 = arith.constant 0 : i32
    %c0_i32_0 = arith.constant 0 : i32
    %c0_i32_1 = arith.constant 0 : i32
    return %c0_i32, %c0_i32_0 : i32, i32
  }
  func.func @transform_6(%arg0: i32) -> (i32, i32) {
    %c0_i32 = arith.constant 0 : i32
    %c0_i32_0 = arith.constant 0 : i32
    %c0_i32_1 = arith.constant 0 : i32
    return %c0_i32, %c0_i32_0 : i32, i32
  }
  func.func @transform_7(%arg0: i32) -> (i32, i32, i32) {
    %c0_i32 = arith.constant 0 : i32
    %c0_i32_0 = arith.constant 0 : i32
    %c0_i32_1 = arith.constant 0 : i32
    return %arg0, %c0_i32, %c0_i32_0 : i32, i32, i32
  }
}

</mosaic_0001>

<llo_original>
// kernel: uib_forward_pallas.1
$region0: #{uib_forward_pallas.1}
  #allocation0 [shape = 'u32[]', space=smem, size = 0x4, offset = 0x4, fixed_abs, tag = 'smem constant byte address 0x4 - core index']
  #allocation1 [shape = 'u32[144,128]{1,0:T(1,128)}', space=vmem, size = 0x12000, scoped, tag = 'internal scratch']
  #allocation2 [shape = 'f32[64,512]{1,0:T(8,128)}', space=vmem, size = 0x20000, scoped, tag = 'scratch operand']
  %s0 = inlined_call_operand.vmem [shape: f32[2,16,256], index: 0, kind: input, shape index: {}]
  %s1 = inlined_call_operand.vmem [shape: f32[64,16], index: 1, kind: input, shape index: {}]
  %s2 = inlined_call_operand.vmem [shape: f32[64,1], index: 2, kind: input, shape index: {}]
  %s3 = inlined_call_operand.vmem [shape: f32[64,9], index: 3, kind: input, shape index: {}]
  %s4 = inlined_call_operand.vmem [shape: f32[64,1], index: 4, kind: input, shape index: {}]
  %s5 = inlined_call_operand.vmem [shape: f32[16,64], index: 5, kind: input, shape index: {}]
  %s6 = inlined_call_operand.vmem [shape: f32[16,1], index: 6, kind: input, shape index: {}]
  %s7 = inlined_call_operand.vmem [shape: f32[2,16,256], index: 7, kind: output, shape index: {}]
  %s8 = sld [smem:[#allocation0]]
  $region61: #{uib_forward_pallas.1} parent=0
    _
  %s10 = ssub.s32 1, %s8
  %s11 = scalar_select 0, %s10, %s8
  loop: start=0, step=1, limit=4
  $region2: #{uib_forward_pallas.1} parent=0 // loop_pre_header
    _
  $region3: #{uib_forward_pallas.1} parent=0 // loop_header
    %s13 = sphi 0, %s17
    %p14 = scmp.ge.s32.totalorder %s13, 4
    %s23 = sphi 0, %s25
    %s26 = sphi 0, %s23
    %s27 = sphi 0, %s26
    %s43 = sphi 0, %s27
    %s47 = sphi 0, %s47
    %s49 = sphi 0, %s47
    %s50 = sphi 0, %s49
    %s64 = sphi 0, %s50
    %s68 = sphi 0, %s68
    %s70 = sphi 0, %s68
    %s71 = sphi 0, %s70
    %s85 = sphi 0, %s71
    %s89 = sphi 0, %s89
    %s91 = sphi 0, %s89
    %s92 = sphi 0, %s91
    %s106 = sphi 0, %s92
    %s110 = sphi 0, %s110
    %s112 = sphi 0, %s110
    %s113 = sphi 0, %s112
    %s127 = sphi 0, %s113
    %s131 = sphi 0, %s131
    %s133 = sphi 0, %s131
    %s134 = sphi 0, %s133
    %s148 = sphi 0, %s134
    %s152 = sphi 0, %s152
    %s154 = sphi 0, %s152
    %s155 = sphi 0, %s154
    %s169 = sphi 0, %s155
    %s175 = sphi 0, %s177
    %s178 = sphi 0, %s175
    %s179 = sphi 0, %s178
    %s195 = sphi 0, %s179
  $region4: #{uib_forward_pallas.1} parent=0 // loop_header_branch
    %16 = sbr.rel (%p14) target = $region8
  $region5: #{uib_forward_pallas.1} parent=0 // loop_body
    %s18 = ssub.s32 %s13, 1
    %s19 = ssub.s32 %s13, 2
    %s20 = sadd.s32 %s13, 1
    %s21 = ssub.s32 %s13, %s20
    %p22 = scmp.eq.s32.totalorder %s21, 0
    %s24 = sadd.s32 %s23, 1
    %s25 = scalar_select %p22, %s23, %s24
    %p28 = pneg %p22
    %p29 = scmp.eq.s32.totalorder %s13, 1
    %p30 = por %p28, %p29
    %p31 = scmp.ne.s32.totalorder %s23, %s26
    %p32 = scmp.eq.s32.totalorder %s13, 0
    %p33 = por %p31, %p32
    %p34 = scmp.ne.s32.totalorder %s23, %s26
    %p35 = scmp.eq.s32.totalorder %s18, 1
    %p36 = por %p34, %p35
    %p37 = scmp.ne.s32.totalorder %s26, %s27
    %p38 = scmp.eq.s32.totalorder %s18, 0
    %p39 = por %p37, %p38
    %p40 = scmp.ne.s32.totalorder %s26, %s27
    %p41 = scmp.eq.s32.totalorder %s19, 1
    %p42 = por %p40, %p41
    %p44 = scmp.ne.s32.totalorder %s27, %s43
    %p45 = scmp.eq.s32.totalorder %s19, 0
    %p46 = por %p44, %p45
    %s48 = sadd.s32 %s47, 1
    %p51 = scmp.eq.s32.totalorder %s13, 1
    %p52 = scmp.ne.s32.totalorder %s47, %s49
    %p53 = scmp.eq.s32.totalorder %s13, 0
    %p54 = por %p52, %p53
    %p55 = scmp.ne.s32.totalorder %s47, %s49
    %p56 = scmp.eq.s32.totalorder %s18, 1
    %p57 = por %p55, %p56
    %p58 = scmp.ne.s32.totalorder %s49, %s50
    %p59 = scmp.eq.s32.totalorder %s18, 0
    %p60 = por %p58, %p59
    %p61 = scmp.ne.s32.totalorder %s49, %s50
    %p62 = scmp.eq.s32.totalorder %s19, 1
    %p63 = por %p61, %p62
    %p65 = scmp.ne.s32.totalorder %s50, %s64
    %p66 = scmp.eq.s32.totalorder %s19, 0
    %p67 = por %p65, %p66
    %s69 = sadd.s32 %s68, 1
    %p72 = scmp.eq.s32.totalorder %s13, 1
    %p73 = scmp.ne.s32.totalorder %s68, %s70
    %p74 = scmp.eq.s32.totalorder %s13, 0
    %p75 = por %p73, %p74
    %p76 = scmp.ne.s32.totalorder %s68, %s70
    %p77 = scmp.eq.s32.totalorder %s18, 1
    %p78 = por %p76, %p77
    %p79 = scmp.ne.s32.totalorder %s70, %s71
    %p80 = scmp.eq.s32.totalorder %s18, 0
    %p81 = por %p79, %p80
    %p82 = scmp.ne.s32.totalorder %s70, %s71
    %p83 = scmp.eq.s32.totalorder %s19, 1
    %p84 = por %p82, %p83
    %p86 = scmp.ne.s32.totalorder %s71, %s85
    %p87 = scmp.eq.s32.totalorder %s19, 0
    %p88 = por %p86, %p87
    %s90 = sadd.s32 %s89, 1
    %p93 = scmp.eq.s32.totalorder %s13, 1
    %p94 = scmp.ne.s32.totalorder %s89, %s91
    %p95 = scmp.eq.s32.totalorder %s13, 0
    %p96 = por %p94, %p95
    %p97 = scmp.ne.s32.totalorder %s89, %s91
    %p98 = scmp.eq.s32.totalorder %s18, 1
    %p99 = por %p97, %p98
    %p100 = scmp.ne.s32.totalorder %s91, %s92
    %p101 = scmp.eq.s32.totalorder %s18, 0
    %p102 = por %p100, %p101
    %p103 = scmp.ne.s32.totalorder %s91, %s92
    %p104 = scmp.eq.s32.totalorder %s19, 1
    %p105 = por %p103, %p104
    %p107 = scmp.ne.s32.totalorder %s92, %s106
    %p108 = scmp.eq.s32.totalorder %s19, 0
    %p109 = por %p107, %p108
    %s111 = sadd.s32 %s110, 1
    %p114 = scmp.eq.s32.totalorder %s13, 1
    %p115 = scmp.ne.s32.totalorder %s110, %s112
    %p116 = scmp.eq.s32.totalorder %s13, 0
    %p117 = por %p115, %p116
    %p118 = scmp.ne.s32.totalorder %s110, %s112
    %p119 = scmp.eq.s32.totalorder %s18, 1
    %p120 = por %p118, %p119
    %p121 = scmp.ne.s32.totalorder %s112, %s113
    %p122 = scmp.eq.s32.totalorder %s18, 0
    %p123 = por %p121, %p122
    %p124 = scmp.ne.s32.totalorder %s112, %s113
    %p125 = scmp.eq.s32.totalorder %s19, 1
    %p126 = por %p124, %p125
    %p128 = scmp.ne.s32.totalorder %s113, %s127
    %p129 = scmp.eq.s32.totalorder %s19, 0
    %p130 = por %p128, %p129
    %s132 = sadd.s32 %s131, 1
    %p135 = scmp.eq.s32.totalorder %s13, 1
    %p136 = scmp.ne.s32.totalorder %s131, %s133
    %p137 = scmp.eq.s32.totalorder %s13, 0
    %p138 = por %p136, %p137
    %p139 = scmp.ne.s32.totalorder %s131, %s133
    %p140 = scmp.eq.s32.totalorder %s18, 1
    %p141 = por %p139, %p140
    %p142 = scmp.ne.s32.totalorder %s133, %s134
    %p143 = scmp.eq.s32.totalorder %s18, 0
    %p144 = por %p142, %p143
    %p145 = scmp.ne.s32.totalorder %s133, %s134
    %p146 = scmp.eq.s32.totalorder %s19, 1
    %p147 = por %p145, %p146
    %p149 = scmp.ne.s32.totalorder %s134, %s148
    %p150 = scmp.eq.s32.totalorder %s19, 0
    %p151 = por %p149, %p150
    %s153 = sadd.s32 %s152, 1
    %p156 = scmp.eq.s32.totalorder %s13, 1
    %p157 = scmp.ne.s32.totalorder %s152, %s154
    %p158 = scmp.eq.s32.totalorder %s13, 0
    %p159 = por %p157, %p158
    %p160 = scmp.ne.s32.totalorder %s152, %s154
    %p161 = scmp.eq.s32.totalorder %s18, 1
    %p162 = por %p160, %p161
    %p163 = scmp.ne.s32.totalorder %s154, %s155
    %p164 = scmp.eq.s32.totalorder %s18, 0
    %p165 = por %p163, %p164
    %p166 = scmp.ne.s32.totalorder %s154, %s155
    %p167 = scmp.eq.s32.totalorder %s19, 1
    %p168 = por %p166, %p167
    %p170 = scmp.ne.s32.totalorder %s155, %s169
    %p171 = scmp.eq.s32.totalorder %s19, 0
    %p172 = por %p170, %p171
    %s173 = ssub.s32 %s13, %s20
    %p174 = scmp.eq.s32.totalorder %s173, 0
    %s176 = sadd.s32 %s175, 1
    %s177 = scalar_select %p174, %s175, %s176
    %p180 = pneg %p174
    %p181 = scmp.eq.s32.totalorder %s13, 1
    %p182 = por %p180, %p181
    %p183 = scmp.ne.s32.totalorder %s175, %s178
    %p184 = scmp.eq.s32.totalorder %s13, 0
    %p185 = por %p183, %p184
    %p186 = scmp.ne.s32.totalorder %s175, %s178
    %p187 = scmp.eq.s32.totalorder %s18, 1
    %p188 = por %p186, %p187
    %p189 = scmp.ne.s32.totalorder %s178, %s179
    %p190 = scmp.eq.s32.totalorder %s18, 0
    %p191 = por %p189, %p190
    %p192 = scmp.ne.s32.totalorder %s178, %s179
    %p193 = scmp.eq.s32.totalorder %s19, 1
    %p194 = por %p192, %p193
    %p196 = scmp.ne.s32.totalorder %s179, %s195
    %p197 = scmp.eq.s32.totalorder %s19, 0
    %p198 = por %p196, %p197
    %p199 = scmp.le.s32.totalorder 1, %s13
    %p200 = scmp.lt.s32.totalorder %s13, 3
    %p201 = pnand %p199, %p200
    %p202 = pneg %p201
    // Predicated region
    $region9: #{uib_forward_pallas.1} parent=5 // pred_check
      _
    $region10: #{uib_forward_pallas.1} parent=5 // pred_check_branch
      %204 = sbr.rel (%p201) target = $region12
    $region11: #{uib_forward_pallas.1} parent=5 // pred_region
      %s205 = ssub.s32 %s13, 1
      // Predicated region
      $region13: #{uib_forward_pallas.1} parent=11 // pred_check
        %p206 = pneg %p60
      $region14: #{uib_forward_pallas.1} parent=11 // pred_check_branch
        %208 = sbr.rel (%p206) target = $region16
      $region15: #{uib_forward_pallas.1} parent=11 // pred_region
        _
      $region16: #{uib_forward_pallas.1} parent=11 // pred_fallthru
        _
      // Predicated region
      $region17: #{uib_forward_pallas.1} parent=11 // pred_check
        %p209 = pneg %p81
      $region18: #{uib_forward_pallas.1} parent=11 // pred_check_branch
        %211 = sbr.rel (%p209) target = $region20
      $region19: #{uib_forward_pallas.1} parent=11 // pred_region
        _
      $region20: #{uib_forward_pallas.1} parent=11 // pred_fallthru
        _
      // Predicated region
      $region21: #{uib_forward_pallas.1} parent=11 // pred_check
        %p212 = pneg %p102
      $region22: #{uib_forward_pallas.1} parent=11 // pred_check_branch
        %214 = sbr.rel (%p212) target = $region24
      $region23: #{uib_forward_pallas.1} parent=11 // pred_region
        _
      $region24: #{uib_forward_pallas.1} parent=11 // pred_fallthru
        _
      // Predicated region
      $region25: #{uib_forward_pallas.1} parent=11 // pred_check
        %p215 = pneg %p123
      $region26: #{uib_forward_pallas.1} parent=11 // pred_check_branch
        %217 = sbr.rel (%p215) target = $region28
      $region27: #{uib_forward_pallas.1} parent=11 // pred_region
        _
      $region28: #{uib_forward_pallas.1} parent=11 // pred_fallthru
        _
      // Predicated region
      $region29: #{uib_forward_pallas.1} parent=11 // pred_check
        %p218 = pneg %p144
      $region30: #{uib_forward_pallas.1} parent=11 // pred_check_branch
        %220 = sbr.rel (%p218) target = $region32
      $region31: #{uib_forward_pallas.1} parent=11 // pred_region
        _
      $region32: #{uib_forward_pallas.1} parent=11 // pred_fallthru
        _
      // Predicated region
      $region33: #{uib_forward_pallas.1} parent=11 // pred_check
        %p221 = pneg %p165
      $region34: #{uib_forward_pallas.1} parent=11 // pred_check_branch
        %223 = sbr.rel (%p221) target = $region36
      $region35: #{uib_forward_pallas.1} parent=11 // pred_region
        _
      $region36: #{uib_forward_pallas.1} parent=11 // pred_fallthru
        _
    $region12: #{uib_forward_pallas.1} parent=5 // pred_fallthru
      _
    %p224 = scmp.lt.s32.totalorder %s13, 2
    // Predicated region
    $region37: #{uib_forward_pallas.1} parent=5 // pred_check
      %p225 = pneg %p224
    $region38: #{uib_forward_pallas.1} parent=5 // pred_check_branch
      %227 = sbr.rel (%p225) target = $region40
    $region39: #{uib_forward_pallas.1} parent=5 // pred_region
      // Predicated region
      $region41: #{uib_forward_pallas.1} parent=39 // pred_check
        %p228 = pneg %p33
      $region42: #{uib_forward_pallas.1} parent=39 // pred_check_branch
        %230 = sbr.rel (%p228) target = $region44
      $region43: #{uib_forward_pallas.1} parent=39 // pred_region
        %p231 = scmp.lt.s32.totalorder %s13, 1
        %s232 = scalar_select %p231, %s13, 1
        %s233 = smul.addr %s232, 4
        %s234 = smul.addr %s233, 8
        %s235 = scalar_lea.vmem %s0, %s234
      $region44: #{uib_forward_pallas.1} parent=39 // pred_fallthru
        _
    $region40: #{uib_forward_pallas.1} parent=5 // pred_fallthru
      _
    %p236 = scmp.le.s32.totalorder 1, %s13
    %p237 = scmp.lt.s32.totalorder %s13, 3
    %p238 = pnand %p236, %p237
    %p239 = pneg %p238
    // Predicated region
    $region45: #{uib_forward_pallas.1} parent=5 // pred_check
      _
    $region46: #{uib_forward_pallas.1} parent=5 // pred_check_branch
      %241 = sbr.rel (%p238) target = $region48
    $region47: #{uib_forward_pallas.1} parent=5 // pred_region
      %s242 = ssub.s32 %s13, 1
      %p243 = scmp.lt.s32.totalorder %s18, 1
      %s244 = scalar_select %p243, %s18, 1
      %s245 = smul.addr %s244, 4
      %s246 = smul.addr %s245, 8
      %s247 = scalar_lea.vmem %s0, %s246
      %p248 = pneg %p39
      %p249 = pneg %p36
      %p250 = pneg %p60
      %p251 = pneg %p57
      %p252 = pneg %p81
      %p253 = pneg %p78
      %p254 = pneg %p102
      %p255 = pneg %p99
      %p256 = pneg %p123
      %p257 = pneg %p120
      %p258 = pneg %p144
      %p259 = pneg %p141
      %p260 = pneg %p165
      %p261 = pneg %p162
      %p262 = pneg %p191
      %p263 = pneg %p188
      %p264 = scmp.lt.s32.totalorder %s18, 1
      %s265 = scalar_select %p264, %s18, 1
      %s266 = smul.addr %s265, 4
      %s267 = smul.addr %s266, 8
      %s268 = scalar_lea.vmem %s7, %s267
      %p269 = scmp.lt.s32.totalorder %s18, 1
      %s270 = scalar_select %p269, %s18, 1
      %s271 = smul.addr %s270, 4
      %s272 = smul.addr %s271, 8
      %s273 = scalar_lea.vmem %s0, %s272
      %p274 = scmp.lt.s32.totalorder %s18, 1
      %s275 = scalar_select %p274, %s18, 1
      %s276 = smul.addr %s275, 4
      %s277 = smul.addr %s276, 8
      %s278 = scalar_lea.vmem %s7, %s277
      %v279 = vld [vmem:[%s273] sm:$0xff]
      %v280 = vld [vmem:[%s273 + $0x8] sm:$0xff]
      %v281 = vld [vmem:[%s273 + $0x10] sm:$0xff]
      %v282 = vld [vmem:[%s273 + $0x18] sm:$0xff]
      %v283 = vld [vmem:[%s1] sm:$0xff]
      %v284 = vld [vmem:[%s1 + $0x8] sm:$0xff]
      %v285 = vld [vmem:[%s1 + $0x10] sm:$0xff]
      %v286 = vld [vmem:[%s1 + $0x18] sm:$0xff]
      %v287 = vld [vmem:[%s1 + $0x20] sm:$0xff]
      %v288 = vld [vmem:[%s1 + $0x28] sm:$0xff]
      %v289 = vld [vmem:[%s1 + $0x30] sm:$0xff]
      %v290 = vld [vmem:[%s1 + $0x38] sm:$0xff]
      %v291 = vld [vmem:[%s2] sm:$0xff]
      %v292 = vld [vmem:[%s2 + $0x8] sm:$0xff]
      %v293 = vld [vmem:[%s2 + $0x10] sm:$0xff]
      %v294 = vld [vmem:[%s2 + $0x18] sm:$0xff]
      %v295 = vld [vmem:[%s2 + $0x20] sm:$0xff]
      %v296 = vld [vmem:[%s2 + $0x28] sm:$0xff]
      %v297 = vld [vmem:[%s2 + $0x30] sm:$0xff]
      %v298 = vld [vmem:[%s2 + $0x38] sm:$0xff]
      %300 = vset.pattern.permute.xlu0 0
      %301 = vperm.xlu0 %300, %v291
      %v302 = vpop.permute.xlu0 %301
      %305 = vset.pattern.permute.xlu0 0
      %306 = vperm.xlu0 %305, %v292
      %v307 = vpop.permute.xlu0 %306
      %310 = vset.pattern.permute.xlu0 0
      %311 = vperm.xlu0 %310, %v293
      %v312 = vpop.permute.xlu0 %311
      %315 = vset.pattern.permute.xlu0 0
      %316 = vperm.xlu0 %315, %v294
      %v317 = vpop.permute.xlu0 %316
      %320 = vset.pattern.permute.xlu0 0
      %321 = vperm.xlu0 %320, %v295
      %v322 = vpop.permute.xlu0 %321
      %325 = vset.pattern.permute.xlu0 0
      %326 = vperm.xlu0 %325, %v296
      %v327 = vpop.permute.xlu0 %326
      %330 = vset.pattern.permute.xlu0 0
      %331 = vperm.xlu0 %330, %v297
      %v332 = vpop.permute.xlu0 %331
      %335 = vset.pattern.permute.xlu0 0
      %336 = vperm.xlu0 %335, %v298
      %v337 = vpop.permute.xlu0 %336
      %vm339 = vcmask 130048
      %v341 = vsel %vm339, %v283, 0
      %v344 = vsel %vm339, %v284, 0
      %v347 = vsel %vm339, %v285, 0
      %v350 = vsel %vm339, %v286, 0
      %v353 = vsel %vm339, %v287, 0
      %v356 = vsel %vm339, %v288, 0
      %v359 = vsel %vm339, %v289, 0
      %v362 = vsel %vm339, %v290, 0
      %364 = vmatprep.subr.mxu0 0.0
      %365 = vmatpush1.msra.mxu0 0.0
      %366 = vmatprep.subr.mxu0 0.0
      %367 = vmatpush1.msra.mxu0 0.0
      %368 = vmatprep.subr.mxu0 0.0
      %369 = vmatpush1.msra.mxu0 0.0
      %370 = vmatprep.subr.mxu0 0.0
      %371 = vmatpush1.msra.mxu0 0.0
      %372 = vmatprep.subr.mxu0 0.0
      %373 = vmatpush1.msra.mxu0 0.0
      %374 = vmatprep.subr.mxu0 0.0
      %375 = vmatpush1.msra.mxu0 0.0
      %376 = vmatprep.subr.mxu0 0.0
      %377 = vmatpush1.msra.mxu0 0.0
      %378 = vmatprep.subr.mxu0 0.0
      %379 = vmatpush1.msra.mxu0 0.0
      %380 = vmatprep.subr.mxu0 0.0
      %381 = vmatpush1.msra.mxu0 0.0
      %382 = vmatprep.subr.mxu0 0.0
      %383 = vmatpush1.msra.mxu0 0.0
      %384 = vmatprep.subr.mxu0 0.0
      %385 = vmatpush1.msra.mxu0 0.0
      %386 = vmatprep.subr.mxu0 0.0
      %387 = vmatpush1.msra.mxu0 0.0
      %388 = vmatprep.subr.mxu0 0.0
      %389 = vmatpush1.msra.mxu0 0.0
      %390 = vmatprep.subr.mxu0 0.0
      %391 = vmatpush1.msra.mxu0 0.0
      %392 = vmatprep.subr.mxu0 %v282
      %393 = vmatpush1.msra.mxu0 %v281
      %394 = vmatprep.subr.mxu0 %v280
      %395 = vmatpush1.msra.mxu0 %v279
      %396 = vmatprep.subr.mxu0 0.0
      %397 = vmatpush2.msra.mxu0 0.0
      %398 = vmatprep.subr.mxu0 0.0
      %399 = vmatpush2.msra.mxu0 0.0
      %400 = vmatprep.subr.mxu0 0.0
      %401 = vmatpush2.msra.mxu0 0.0
      %402 = vmatprep.subr.mxu0 0.0
      %403 = vmatpush2.msra.mxu0 0.0
      %404 = vmatprep.subr.mxu0 0.0
      %405 = vmatpush2.msra.mxu0 0.0
      %406 = vmatprep.subr.mxu0 0.0
      %407 = vmatpush2.msra.mxu0 0.0
      %408 = vmatprep.subr.mxu0 0.0
      %409 = vmatpush2.msra.mxu0 0.0
      %410 = vmatprep.subr.mxu0 0.0
      %411 = vmatpush2.msra.mxu0 0.0
      %412 = vmatprep.subr.mxu0 0.0
      %413 = vmatpush2.msra.mxu0 0.0
      %414 = vmatprep.subr.mxu0 0.0
      %415 = vmatpush2.msra.mxu0 0.0
      %416 = vmatprep.subr.mxu0 0.0
      %417 = vmatpush2.msra.mxu0 0.0
      %418 = vmatprep.subr.mxu0 0.0
      %419 = vmatpush2.msra.mxu0 0.0
      %420 = vmatprep.subr.mxu0 0.0
      %421 = vmatpush2.msra.mxu0 0.0
      %422 = vmatprep.subr.mxu0 0.0
      %423 = vmatpush2.msra.mxu0 0.0
      %424 = vmatprep.subr.mxu0 0.0
      %425 = vmatpush2.msra.mxu0 0.0
      %426 = vmatprep.subr.mxu0 0.0
      %427 = vmatpush2.msra.mxu0 0.0
      %428 = vmatprep.mubr.f32.mxu0 0.0
      %429 = vmatmul.mubr.f32.gmra.mxu0 %v341
      %v430 = vpop.f32.mrf.mxu0
      %v431 = vadd.f32 %v302, %v430
      %v432 = vpop.f32.mrf.mxu0
      %v433 = vadd.f32 %v302, %v432
      %434 = vmatprep.mubr.f32.mxu0 0.0
      %435 = vmatmul.mubr.f32.gmra.mxu0 %v344
      %v436 = vpop.f32.mrf.mxu0
      %v437 = vadd.f32 %v307, %v436
      %v438 = vpop.f32.mrf.mxu0
      %v439 = vadd.f32 %v307, %v438
      %440 = vmatprep.mubr.f32.mxu0 0.0
      %441 = vmatmul.mubr.f32.gmra.mxu0 %v347
      %v442 = vpop.f32.mrf.mxu0
      %v443 = vadd.f32 %v312, %v442
      %v444 = vpop.f32.mrf.mxu0
      %v445 = vadd.f32 %v312, %v444
      %446 = vmatprep.mubr.f32.mxu0 0.0
      %447 = vmatmul.mubr.f32.gmra.mxu0 %v350
      %v448 = vpop.f32.mrf.mxu0
      %v449 = vadd.f32 %v317, %v448
      %v450 = vpop.f32.mrf.mxu0
      %v451 = vadd.f32 %v317, %v450
      %452 = vmatprep.mubr.f32.mxu0 0.0
      %453 = vmatmul.mubr.f32.gmra.mxu0 %v353
      %v454 = vpop.f32.mrf.mxu0
      %v455 = vadd.f32 %v322, %v454
      %v456 = vpop.f32.mrf.mxu0
      %v457 = vadd.f32 %v322, %v456
      %458 = vmatprep.mubr.f32.mxu0 0.0
      %459 = vmatmul.mubr.f32.gmra.mxu0 %v356
      %v460 = vpop.f32.mrf.mxu0
      %v461 = vadd.f32 %v327, %v460
      %v462 = vpop.f32.mrf.mxu0
      %v463 = vadd.f32 %v327, %v462
      %464 = vmatprep.mubr.f32.mxu0 0.0
      %465 = vmatmul.mubr.f32.gmra.mxu0 %v359
      %v466 = vpop.f32.mrf.mxu0
      %v467 = vadd.f32 %v332, %v466
      %v468 = vpop.f32.mrf.mxu0
      %v469 = vadd.f32 %v332, %v468
      %470 = vmatprep.mubr.f32.mxu0 0.0
      %471 = vmatmul.mubr.f32.gmra.mxu0 %v362
      %v472 = vpop.f32.mrf.mxu0
      %v473 = vadd.f32 %v337, %v472
      %v474 = vpop.f32.mrf.mxu0
      %v475 = vadd.f32 %v337, %v474
      %476 = vdwg.mxu0
      %v477 = vmax.f32 %v431, 0.0
      %v478 = vmax.f32 %v433, 0.0
      %v479 = vmax.f32 %v437, 0.0
      %v480 = vmax.f32 %v439, 0.0
      %v481 = vmax.f32 %v443, 0.0
      %v482 = vmax.f32 %v445, 0.0
      %v483 = vmax.f32 %v449, 0.0
      %v484 = vmax.f32 %v451, 0.0
      %v485 = vmax.f32 %v455, 0.0
      %v486 = vmax.f32 %v457, 0.0
      %v487 = vmax.f32 %v461, 0.0
      %v488 = vmax.f32 %v463, 0.0
      %v489 = vmax.f32 %v467, 0.0
      %v490 = vmax.f32 %v469, 0.0
      %v491 = vmax.f32 %v473, 0.0
      %v492 = vmax.f32 %v475, 0.0
      %vm493 = vcmask 1048448
      %494 = vst.msk [vmem:[#allocation2] sm:$0xff] %vm493, 0.0
      %495 = vst.msk [vmem:[#allocation2 + $0x20] sm:$0xff] %vm493, 0.0
      %496 = vst.msk [vmem:[#allocation2 + $0x40] sm:$0xff] %vm493, 0.0
      %497 = vst.msk [vmem:[#allocation2 + $0x60] sm:$0xff] %vm493, 0.0
      %498 = vst.msk [vmem:[#allocation2 + $0x80] sm:$0xff] %vm493, 0.0
      %499 = vst.msk [vmem:[#allocation2 + $0xa0] sm:$0xff] %vm493, 0.0
      %500 = vst.msk [vmem:[#allocation2 + $0xc0] sm:$0xff] %vm493, 0.0
      %501 = vst.msk [vmem:[#allocation2 + $0xe0] sm:$0xff] %vm493, 0.0
      %502 = vst.msk [vmem:[#allocation2 + $0x18] sm:$0xff] %vm339, 0.0
      %503 = vst.msk [vmem:[#allocation2 + $0x38] sm:$0xff] %vm339, 0.0
      %504 = vst.msk [vmem:[#allocation2 + $0x58] sm:$0xff] %vm339, 0.0
      %505 = vst.msk [vmem:[#allocation2 + $0x78] sm:$0xff] %vm339, 0.0
      %506 = vst.msk [vmem:[#allocation2 + $0x98] sm:$0xff] %vm339, 0.0
      %507 = vst.msk [vmem:[#allocation2 + $0xb8] sm:$0xff] %vm339, 0.0
      %508 = vst.msk [vmem:[#allocation2 + $0xd8] sm:$0xff] %vm339, 0.0
      %509 = vst.msk [vmem:[#allocation2 + $0xf8] sm:$0xff] %vm339, 0.0
      %510 = vst [vmem:[#allocation2 + $0x8] sm:$0xff] %v477
      %511 = vst [vmem:[#allocation2 + $0x10] sm:$0xff] %v478
      %512 = vst [vmem:[#allocation2 + $0x28] sm:$0xff] %v479
      %513 = vst [vmem:[#allocation2 + $0x30] sm:$0xff] %v480
      %514 = vst [vmem:[#allocation2 + $0x48] sm:$0xff] %v481
      %515 = vst [vmem:[#allocation2 + $0x50] sm:$0xff] %v482
      %516 = vst [vmem:[#allocation2 + $0x68] sm:$0xff] %v483
      %517 = vst [vmem:[#allocation2 + $0x70] sm:$0xff] %v484
      %518 = vst [vmem:[#allocation2 + $0x88] sm:$0xff] %v485
      %519 = vst [vmem:[#allocation2 + $0x90] sm:$0xff] %v486
      %520 = vst [vmem:[#allocation2 + $0xa8] sm:$0xff] %v487
      %521 = vst [vmem:[#allocation2 + $0xb0] sm:$0xff] %v488
      %522 = vst [vmem:[#allocation2 + $0xc8] sm:$0xff] %v489
      %523 = vst [vmem:[#allocation2 + $0xd0] sm:$0xff] %v490
      %524 = vst [vmem:[#allocation2 + $0xe8] sm:$0xff] %v491
      %525 = vst [vmem:[#allocation2 + $0xf0] sm:$0xff] %v492
      %v526 = vlaneseq
      %v527 = vand.u32 %v526, 127
      %v528 = vadd.s32 %v527, 128
      %v529 = vand.u32 %v527, 15
      %v530 = vand.u32 %v528, 15
      %v531 = vld [vmem:[#allocation2] sm:$0xff]
      %v532 = vld [vmem:[#allocation2 + $0x8] sm:$0xff]
      %v533 = vld [vmem:[#allocation2 + $0x10] sm:$0xff]
      %v534 = vld [vmem:[#allocation2 + $0x20] sm:$0xff]
      %v535 = vld [vmem:[#allocation2 + $0x28] sm:$0xff]
      %v536 = vld [vmem:[#allocation2 + $0x30] sm:$0xff]
      %v537 = vld [vmem:[#allocation2 + $0x40] sm:$0xff]
      %v538 = vld [vmem:[#allocation2 + $0x48] sm:$0xff]
      %v539 = vld [vmem:[#allocation2 + $0x50] sm:$0xff]
      %v540 = vld [vmem:[#allocation2 + $0x60] sm:$0xff]
      %v541 = vld [vmem:[#allocation2 + $0x68] sm:$0xff]
      %v542 = vld [vmem:[#allocation2 + $0x70] sm:$0xff]
      %v543 = vld [vmem:[#allocation2 + $0x80] sm:$0xff]
      %v544 = vld [vmem:[#allocation2 + $0x88] sm:$0xff]
      %v545 = vld [vmem:[#allocation2 + $0x90] sm:$0xff]
      %v546 = vld [vmem:[#allocation2 + $0xa0] sm:$0xff]
      %v547 = vld [vmem:[#allocation2 + $0xa8] sm:$0xff]
      %v548 = vld [vmem:[#allocation2 + $0xb0] sm:$0xff]
      %v549 = vld [vmem:[#allocation2 + $0xc0] sm:$0xff]
      %v550 = vld [vmem:[#allocation2 + $0xc8] sm:$0xff]
      %v551 = vld [vmem:[#allocation2 + $0xd0] sm:$0xff]
      %v552 = vld [vmem:[#allocation2 + $0xe0] sm:$0xff]
      %v553 = vld [vmem:[#allocation2 + $0xe8] sm:$0xff]
      %v554 = vld [vmem:[#allocation2 + $0xf0] sm:$0xff]
      %v555 = vld [vmem:[%s3] sm:$0xff]
      %v556 = vld [vmem:[%s3 + $0x8] sm:$0xff]
      %v557 = vld [vmem:[%s3 + $0x10] sm:$0xff]
      %v558 = vld [vmem:[%s3 + $0x18] sm:$0xff]
      %v559 = vld [vmem:[%s3 + $0x20] sm:$0xff]
      %v560 = vld [vmem:[%s3 + $0x28] sm:$0xff]
      %v561 = vld [vmem:[%s3 + $0x30] sm:$0xff]
      %v562 = vld [vmem:[%s3 + $0x38] sm:$0xff]
      %564 = vset.pattern.permute.xlu0 0
      %565 = vperm.xlu0 %564, %v555
      %v566 = vpop.permute.xlu0 %565
      %569 = vset.pattern.permute.xlu0 0
      %570 = vperm.xlu0 %569, %v556
      %v571 = vpop.permute.xlu0 %570
      %574 = vset.pattern.permute.xlu0 0
      %575 = vperm.xlu0 %574, %v557
      %v576 = vpop.permute.xlu0 %575
      %579 = vset.pattern.permute.xlu0 0
      %580 = vperm.xlu0 %579, %v558
      %v581 = vpop.permute.xlu0 %580
      %584 = vset.pattern.permute.xlu0 0
      %585 = vperm.xlu0 %584, %v559
      %v586 = vpop.permute.xlu0 %585
      %589 = vset.pattern.permute.xlu0 0
      %590 = vperm.xlu0 %589, %v560
      %v591 = vpop.permute.xlu0 %590
      %594 = vset.pattern.permute.xlu0 0
      %595 = vperm.xlu0 %594, %v561
      %v596 = vpop.permute.xlu0 %595
      %599 = vset.pattern.permute.xlu0 0
      %600 = vperm.xlu0 %599, %v562
      %v601 = vpop.permute.xlu0 %600
      %v603 = vmul.f32 %v566, %v531
      %v604 = vmul.f32 %v566, %v532
      %v605 = vmul.f32 %v566, %v533
      %v606 = vmul.f32 %v571, %v534
      %v607 = vmul.f32 %v571, %v535
      %v608 = vmul.f32 %v571, %v536
      %v609 = vmul.f32 %v576, %v537
      %v610 = vmul.f32 %v576, %v538
      %v611 = vmul.f32 %v576, %v539
      %v612 = vmul.f32 %v581, %v540
      %v613 = vmul.f32 %v581, %v541
      %v614 = vmul.f32 %v581, %v542
      %v615 = vmul.f32 %v586, %v543
      %v616 = vmul.f32 %v586, %v544
      %v617 = vmul.f32 %v586, %v545
      %v618 = vmul.f32 %v591, %v546
      %v619 = vmul.f32 %v591, %v547
      %v620 = vmul.f32 %v591, %v548
      %v621 = vmul.f32 %v596, %v549
      %v622 = vmul.f32 %v596, %v550
      %v623 = vmul.f32 %v596, %v551
      %v624 = vmul.f32 %v601, %v552
      %v625 = vmul.f32 %v601, %v553
      %v626 = vmul.f32 %v601, %v554
      %v627 = vadd.f32 %v603, 0.0
      %v628 = vadd.f32 %v604, 0.0
      %v629 = vadd.f32 %v605, 0.0
      %v630 = vadd.f32 %v606, 0.0
      %v631 = vadd.f32 %v607, 0.0
      %v632 = vadd.f32 %v608, 0.0
      %v633 = vadd.f32 %v609, 0.0
      %v634 = vadd.f32 %v610, 0.0
      %v635 = vadd.f32 %v611, 0.0
      %v636 = vadd.f32 %v612, 0.0
      %v637 = vadd.f32 %v613, 0.0
      %v638 = vadd.f32 %v614, 0.0
      %v639 = vadd.f32 %v615, 0.0
      %v640 = vadd.f32 %v616, 0.0
      %v641 = vadd.f32 %v617, 0.0
      %v642 = vadd.f32 %v618, 0.0
      %v643 = vadd.f32 %v619, 0.0
      %v644 = vadd.f32 %v620, 0.0
      %v645 = vadd.f32 %v621, 0.0
      %v646 = vadd.f32 %v622, 0.0
      %v647 = vadd.f32 %v623, 0.0
      %v648 = vadd.f32 %v624, 0.0
      %v649 = vadd.f32 %v625, 0.0
      %v650 = vadd.f32 %v626, 0.0
      %651 = vset.pattern.permute.xlu0 3
      %652 = vperm.xlu0 %651, %v555
      %v653 = vpop.permute.xlu0 %652
      %655 = vset.pattern.permute.xlu0 3
      %656 = vperm.xlu0 %655, %v556
      %v657 = vpop.permute.xlu0 %656
      %659 = vset.pattern.permute.xlu0 3
      %660 = vperm.xlu0 %659, %v557
      %v661 = vpop.permute.xlu0 %660
      %663 = vset.pattern.permute.xlu0 3
      %664 = vperm.xlu0 %663, %v558
      %v665 = vpop.permute.xlu0 %664
      %667 = vset.pattern.permute.xlu0 3
      %668 = vperm.xlu0 %667, %v559
      %v669 = vpop.permute.xlu0 %668
      %671 = vset.pattern.permute.xlu0 3
      %672 = vperm.xlu0 %671, %v560
      %v673 = vpop.permute.xlu0 %672
      %675 = vset.pattern.permute.xlu0 3
      %676 = vperm.xlu0 %675, %v561
      %v677 = vpop.permute.xlu0 %676
      %679 = vset.pattern.permute.xlu0 3
      %680 = vperm.xlu0 %679, %v562
      %v681 = vpop.permute.xlu0 %680
      %v683 = vmul.f32 %v653, %v531
      %v684 = vmul.f32 %v653, %v532
      %v685 = vmul.f32 %v653, %v533
      %v686 = vmul.f32 %v657, %v534
      %v687 = vmul.f32 %v657, %v535
      %v688 = vmul.f32 %v657, %v536
      %v689 = vmul.f32 %v661, %v537
      %v690 = vmul.f32 %v661, %v538
      %v691 = vmul.f32 %v661, %v539
      %v692 = vmul.f32 %v665, %v540
      %v693 = vmul.f32 %v665, %v541
      %v694 = vmul.f32 %v665, %v542
      %v695 = vmul.f32 %v669, %v543
      %v696 = vmul.f32 %v669, %v544
      %v697 = vmul.f32 %v669, %v545
      %v698 = vmul.f32 %v673, %v546
      %v699 = vmul.f32 %v673, %v547
      %v700 = vmul.f32 %v673, %v548
      %v701 = vmul.f32 %v677, %v549
      %v702 = vmul.f32 %v677, %v550
      %v703 = vmul.f32 %v677, %v551
      %v704 = vmul.f32 %v681, %v552
      %v705 = vmul.f32 %v681, %v553
      %v706 = vmul.f32 %v681, %v554
      %731 = vrot.lane.b32.xlu0 %v683, 112
      %v732 = vpop.permute.xlu0 %731
      %733 = vrot.lane.b32.xlu0 %v684, 112
      %v734 = vpop.permute.xlu0 %733
      %735 = vrot.lane.b32.xlu0 %v685, 112
      %v736 = vpop.permute.xlu0 %735
      %737 = vrot.lane.b32.xlu0 %v686, 112
      %v738 = vpop.permute.xlu0 %737
      %739 = vrot.lane.b32.xlu0 %v687, 112
      %v740 = vpop.permute.xlu0 %739
      %741 = vrot.lane.b32.xlu0 %v688, 112
      %v742 = vpop.permute.xlu0 %741
      %743 = vrot.lane.b32.xlu0 %v689, 112
      %v744 = vpop.permute.xlu0 %743
      %745 = vrot.lane.b32.xlu0 %v690, 112
      %v746 = vpop.permute.xlu0 %745
      %747 = vrot.lane.b32.xlu0 %v691, 112
      %v748 = vpop.permute.xlu0 %747
      %749 = vrot.lane.b32.xlu0 %v692, 112
      %v750 = vpop.permute.xlu0 %749
      %751 = vrot.lane.b32.xlu0 %v693, 112
      %v752 = vpop.permute.xlu0 %751
      %753 = vrot.lane.b32.xlu0 %v694, 112
      %v754 = vpop.permute.xlu0 %753
      %755 = vrot.lane.b32.xlu0 %v695, 112
      %v756 = vpop.permute.xlu0 %755
      %757 = vrot.lane.b32.xlu0 %v696, 112
      %v758 = vpop.permute.xlu0 %757
      %759 = vrot.lane.b32.xlu0 %v697, 112
      %v760 = vpop.permute.xlu0 %759
      %761 = vrot.lane.b32.xlu0 %v698, 112
      %v762 = vpop.permute.xlu0 %761
      %763 = vrot.lane.b32.xlu0 %v699, 112
      %v764 = vpop.permute.xlu0 %763
      %765 = vrot.lane.b32.xlu0 %v700, 112
      %v766 = vpop.permute.xlu0 %765
      %767 = vrot.lane.b32.xlu0 %v701, 112
      %v768 = vpop.permute.xlu0 %767
      %769 = vrot.lane.b32.xlu0 %v702, 112
      %v770 = vpop.permute.xlu0 %769
      %771 = vrot.lane.b32.xlu0 %v703, 112
      %v772 = vpop.permute.xlu0 %771
      %773 = vrot.lane.b32.xlu0 %v704, 112
      %v774 = vpop.permute.xlu0 %773
      %775 = vrot.lane.b32.xlu0 %v705, 112
      %v776 = vpop.permute.xlu0 %775
      %777 = vrot.lane.b32.xlu0 %v706, 112
      %v778 = vpop.permute.xlu0 %777
      %vm779 = vcmask 916480
      %v780 = vsel %vm779, %v732, %v734
      %v781 = vsel %vm779, %v734, %v736
      %v782 = vsel %vm779, %v738, %v740
      %v783 = vsel %vm779, %v740, %v742
      %v784 = vsel %vm779, %v744, %v746
      %v785 = vsel %vm779, %v746, %v748
      %v786 = vsel %vm779, %v750, %v752
      %v787 = vsel %vm779, %v752, %v754
      %v788 = vsel %vm779, %v756, %v758
      %v789 = vsel %vm779, %v758, %v760
      %v790 = vsel %vm779, %v762, %v764
      %v791 = vsel %vm779, %v764, %v766
      %v792 = vsel %vm779, %v768, %v770
      %v793 = vsel %vm779, %v770, %v772
      %v794 = vsel %vm779, %v774, %v776
      %v795 = vsel %vm779, %v776, %v778
      %v820 = vadd.f32 %v627, %v780
      %v821 = vadd.f32 %v628, %v781
      %v822 = vadd.f32 %v629, %v736
      %v823 = vadd.f32 %v630, %v782
      %v824 = vadd.f32 %v631, %v783
      %v825 = vadd.f32 %v632, %v742
      %v826 = vadd.f32 %v633, %v784
      %v827 = vadd.f32 %v634, %v785
      %v828 = vadd.f32 %v635, %v748
      %v829 = vadd.f32 %v636, %v786
      %v830 = vadd.f32 %v637, %v787
      %v831 = vadd.f32 %v638, %v754
      %v832 = vadd.f32 %v639, %v788
      %v833 = vadd.f32 %v640, %v789
      %v834 = vadd.f32 %v641, %v760
      %v835 = vadd.f32 %v642, %v790
      %v836 = vadd.f32 %v643, %v791
      %v837 = vadd.f32 %v644, %v766
      %v838 = vadd.f32 %v645, %v792
      %v839 = vadd.f32 %v646, %v793
      %v840 = vadd.f32 %v647, %v772
      %v841 = vadd.f32 %v648, %v794
      %v842 = vadd.f32 %v649, %v795
      %v843 = vadd.f32 %v650, %v778
      %v844 = vld [vmem:[#allocation2 + $0x8] sm:$0xff]
      %v845 = vld [vmem:[#allocation2 + $0x10] sm:$0xff]
      %v846 = vld [vmem:[#allocation2 + $0x18] sm:$0xff]
      %v847 = vld [vmem:[#allocation2 + $0x28] sm:$0xff]
      %v848 = vld [vmem:[#allocation2 + $0x30] sm:$0xff]
      %v849 = vld [vmem:[#allocation2 + $0x38] sm:$0xff]
      %v850 = vld [vmem:[#allocation2 + $0x48] sm:$0xff]
      %v851 = vld [vmem:[#allocation2 + $0x50] sm:$0xff]
      %v852 = vld [vmem:[#allocation2 + $0x58] sm:$0xff]
      %v853 = vld [vmem:[#allocation2 + $0x68] sm:$0xff]
      %v854 = vld [vmem:[#allocation2 + $0x70] sm:$0xff]
      %v855 = vld [vmem:[#allocation2 + $0x78] sm:$0xff]
      %v856 = vld [vmem:[#allocation2 + $0x88] sm:$0xff]
      %v857 = vld [vmem:[#allocation2 + $0x90] sm:$0xff]
      %v858 = vld [vmem:[#allocation2 + $0x98] sm:$0xff]
      %v859 = vld [vmem:[#allocation2 + $0xa8] sm:$0xff]
      %v860 = vld [vmem:[#allocation2 + $0xb0] sm:$0xff]
      %v861 = vld [vmem:[#allocation2 + $0xb8] sm:$0xff]
      %v862 = vld [vmem:[#allocation2 + $0xc8] sm:$0xff]
      %v863 = vld [vmem:[#allocation2 + $0xd0] sm:$0xff]
      %v864 = vld [vmem:[#allocation2 + $0xd8] sm:$0xff]
      %v865 = vld [vmem:[#allocation2 + $0xe8] sm:$0xff]
      %v866 = vld [vmem:[#allocation2 + $0xf0] sm:$0xff]
      %v867 = vld [vmem:[#allocation2 + $0xf8] sm:$0xff]
      %868 = vset.pattern.permute.xlu0 6
      %869 = vperm.xlu0 %868, %v555
      %v870 = vpop.permute.xlu0 %869
      %872 = vset.pattern.permute.xlu0 6
      %873 = vperm.xlu0 %872, %v556
      %v874 = vpop.permute.xlu0 %873
      %876 = vset.pattern.permute.xlu0 6
      %877 = vperm.xlu0 %876, %v557
      %v878 = vpop.permute.xlu0 %877
      %880 = vset.pattern.permute.xlu0 6
      %881 = vperm.xlu0 %880, %v558
      %v882 = vpop.permute.xlu0 %881
      %884 = vset.pattern.permute.xlu0 6
      %885 = vperm.xlu0 %884, %v559
      %v886 = vpop.permute.xlu0 %885
      %888 = vset.pattern.permute.xlu0 6
      %889 = vperm.xlu0 %888, %v560
      %v890 = vpop.permute.xlu0 %889
      %892 = vset.pattern.permute.xlu0 6
      %893 = vperm.xlu0 %892, %v561
      %v894 = vpop.permute.xlu0 %893
      %896 = vset.pattern.permute.xlu0 6
      %897 = vperm.xlu0 %896, %v562
      %v898 = vpop.permute.xlu0 %897
      %v900 = vmul.f32 %v870, %v844
      %v901 = vmul.f32 %v870, %v845
      %v902 = vmul.f32 %v870, %v846
      %v903 = vmul.f32 %v874, %v847
      %v904 = vmul.f32 %v874, %v848
      %v905 = vmul.f32 %v874, %v849
      %v906 = vmul.f32 %v878, %v850
      %v907 = vmul.f32 %v878, %v851
      %v908 = vmul.f32 %v878, %v852
      %v909 = vmul.f32 %v882, %v853
      %v910 = vmul.f32 %v882, %v854
      %v911 = vmul.f32 %v882, %v855
      %v912 = vmul.f32 %v886, %v856
      %v913 = vmul.f32 %v886, %v857
      %v914 = vmul.f32 %v886, %v858
      %v915 = vmul.f32 %v890, %v859
      %v916 = vmul.f32 %v890, %v860
      %v917 = vmul.f32 %v890, %v861
      %v918 = vmul.f32 %v894, %v862
      %v919 = vmul.f32 %v894, %v863
      %v920 = vmul.f32 %v894, %v864
      %v921 = vmul.f32 %v898, %v865
      %v922 = vmul.f32 %v898, %v866
      %v923 = vmul.f32 %v898, %v867
      %948 = vrot.lane.b32.xlu0 %v900, 96
      %v949 = vpop.permute.xlu0 %948
      %950 = vrot.lane.b32.xlu0 %v901, 96
      %v951 = vpop.permute.xlu0 %950
      %952 = vrot.lane.b32.xlu0 %v902, 96
      %v953 = vpop.permute.xlu0 %952
      %954 = vrot.lane.b32.xlu0 %v903, 96
      %v955 = vpop.permute.xlu0 %954
      %956 = vrot.lane.b32.xlu0 %v904, 96
      %v957 = vpop.permute.xlu0 %956
      %958 = vrot.lane.b32.xlu0 %v905, 96
      %v959 = vpop.permute.xlu0 %958
      %960 = vrot.lane.b32.xlu0 %v906, 96
      %v961 = vpop.permute.xlu0 %960
      %962 = vrot.lane.b32.xlu0 %v907, 96
      %v963 = vpop.permute.xlu0 %962
      %964 = vrot.lane.b32.xlu0 %v908, 96
      %v965 = vpop.permute.xlu0 %964
      %966 = vrot.lane.b32.xlu0 %v909, 96
      %v967 = vpop.permute.xlu0 %966
      %968 = vrot.lane.b32.xlu0 %v910, 96
      %v969 = vpop.permute.xlu0 %968
      %970 = vrot.lane.b32.xlu0 %v911, 96
      %v971 = vpop.permute.xlu0 %970
      %972 = vrot.lane.b32.xlu0 %v912, 96
      %v973 = vpop.permute.xlu0 %972
      %974 = vrot.lane.b32.xlu0 %v913, 96
      %v975 = vpop.permute.xlu0 %974
      %976 = vrot.lane.b32.xlu0 %v914, 96
      %v977 = vpop.permute.xlu0 %976
      %978 = vrot.lane.b32.xlu0 %v915, 96
      %v979 = vpop.permute.xlu0 %978
      %980 = vrot.lane.b32.xlu0 %v916, 96
      %v981 = vpop.permute.xlu0 %980
      %982 = vrot.lane.b32.xlu0 %v917, 96
      %v983 = vpop.permute.xlu0 %982
      %984 = vrot.lane.b32.xlu0 %v918, 96
      %v985 = vpop.permute.xlu0 %984
      %986 = vrot.lane.b32.xlu0 %v919, 96
      %v987 = vpop.permute.xlu0 %986
      %988 = vrot.lane.b32.xlu0 %v920, 96
      %v989 = vpop.permute.xlu0 %988
      %990 = vrot.lane.b32.xlu0 %v921, 96
      %v991 = vpop.permute.xlu0 %990
      %992 = vrot.lane.b32.xlu0 %v922, 96
      %v993 = vpop.permute.xlu0 %992
      %994 = vrot.lane.b32.xlu0 %v923, 96
      %v995 = vpop.permute.xlu0 %994
      %vm996 = vcmask 785408
      %v997 = vsel %vm996, %v949, %v951
      %v998 = vsel %vm996, %v951, %v953
      %v999 = vsel %vm996, %v955, %v957
      %v1000 = vsel %vm996, %v957, %v959
      %v1001 = vsel %vm996, %v961, %v963
      %v1002 = vsel %vm996, %v963, %v965
      %v1003 = vsel %vm996, %v967, %v969
      %v1004 = vsel %vm996, %v969, %v971
      %v1005 = vsel %vm996, %v973, %v975
      %v1006 = vsel %vm996, %v975, %v977
      %v1007 = vsel %vm996, %v979, %v981
      %v1008 = vsel %vm996, %v981, %v983
      %v1009 = vsel %vm996, %v985, %v987
      %v1010 = vsel %vm996, %v987, %v989
      %v1011 = vsel %vm996, %v991, %v993
      %v1012 = vsel %vm996, %v993, %v995
      %v1037 = vadd.f32 %v820, %v949
      %v1038 = vadd.f32 %v821, %v997
      %v1039 = vadd.f32 %v822, %v998
      %v1040 = vadd.f32 %v823, %v955
      %v1041 = vadd.f32 %v824, %v999
      %v1042 = vadd.f32 %v825, %v1000
      %v1043 = vadd.f32 %v826, %v961
      %v1044 = vadd.f32 %v827, %v1001
      %v1045 = vadd.f32 %v828, %v1002
      %v1046 = vadd.f32 %v829, %v967
      %v1047 = vadd.f32 %v830, %v1003
      %v1048 = vadd.f32 %v831, %v1004
      %v1049 = vadd.f32 %v832, %v973
      %v1050 = vadd.f32 %v833, %v1005
      %v1051 = vadd.f32 %v834, %v1006
      %v1052 = vadd.f32 %v835, %v979
      %v1053 = vadd.f32 %v836, %v1007
      %v1054 = vadd.f32 %v837, %v1008
      %v1055 = vadd.f32 %v838, %v985
      %v1056 = vadd.f32 %v839, %v1009
      %v1057 = vadd.f32 %v840, %v1010
      %v1058 = vadd.f32 %v841, %v991
      %v1059 = vadd.f32 %v842, %v1011
      %v1060 = vadd.f32 %v843, %v1012
      %vm1061 = vcmp.ge.s32.totalorder %v529, 1
      %vm1062 = vcmp.ge.s32.totalorder %v530, 1
      %v1063 = vsel %vm1061, 1, 0
      %v1064 = vsel %vm1062, 1, 0
      %vm1065 = vcmp.eq.s32.totalorder %v1063, 1
      %vm1066 = vcmp.eq.s32.totalorder %v1064, 1
      %1091 = vrot.lane.b32.xlu0 %v1037, 17
      %v1092 = vpop.permute.xlu0 %1091
      %1093 = vrot.lane.b32.xlu0 %v1038, 17
      %v1094 = vpop.permute.xlu0 %1093
      %1095 = vrot.lane.b32.xlu0 %v1039, 17
      %v1096 = vpop.permute.xlu0 %1095
      %1097 = vrot.lane.b32.xlu0 %v1040, 17
      %v1098 = vpop.permute.xlu0 %1097
      %1099 = vrot.lane.b32.xlu0 %v1041, 17
      %v1100 = vpop.permute.xlu0 %1099
      %1101 = vrot.lane.b32.xlu0 %v1042, 17
      %v1102 = vpop.permute.xlu0 %1101
      %1103 = vrot.lane.b32.xlu0 %v1043, 17
      %v1104 = vpop.permute.xlu0 %1103
      %1105 = vrot.lane.b32.xlu0 %v1044, 17
      %v1106 = vpop.permute.xlu0 %1105
      %1107 = vrot.lane.b32.xlu0 %v1045, 17
      %v1108 = vpop.permute.xlu0 %1107
      %1109 = vrot.lane.b32.xlu0 %v1046, 17
      %v1110 = vpop.permute.xlu0 %1109
      %1111 = vrot.lane.b32.xlu0 %v1047, 17
      %v1112 = vpop.permute.xlu0 %1111
      %1113 = vrot.lane.b32.xlu0 %v1048, 17
      %v1114 = vpop.permute.xlu0 %1113
      %1115 = vrot.lane.b32.xlu0 %v1049, 17
      %v1116 = vpop.permute.xlu0 %1115
      %1117 = vrot.lane.b32.xlu0 %v1050, 17
      %v1118 = vpop.permute.xlu0 %1117
      %1119 = vrot.lane.b32.xlu0 %v1051, 17
      %v1120 = vpop.permute.xlu0 %1119
      %1121 = vrot.lane.b32.xlu0 %v1052, 17
      %v1122 = vpop.permute.xlu0 %1121
      %1123 = vrot.lane.b32.xlu0 %v1053, 17
      %v1124 = vpop.permute.xlu0 %1123
      %1125 = vrot.lane.b32.xlu0 %v1054, 17
      %v1126 = vpop.permute.xlu0 %1125
      %1127 = vrot.lane.b32.xlu0 %v1055, 17
      %v1128 = vpop.permute.xlu0 %1127
      %1129 = vrot.lane.b32.xlu0 %v1056, 17
      %v1130 = vpop.permute.xlu0 %1129
      %1131 = vrot.lane.b32.xlu0 %v1057, 17
      %v1132 = vpop.permute.xlu0 %1131
      %1133 = vrot.lane.b32.xlu0 %v1058, 17
      %v1134 = vpop.permute.xlu0 %1133
      %1135 = vrot.lane.b32.xlu0 %v1059, 17
      %v1136 = vpop.permute.xlu0 %1135
      %1137 = vrot.lane.b32.xlu0 %v1060, 17
      %v1138 = vpop.permute.xlu0 %1137
      %vm1139 = vcmask 138240
      %v1140 = vsel %vm1139, %v1092, %v1094
      %v1141 = vsel %vm1139, %v1094, %v1096
      %v1142 = vsel %vm1139, %v1098, %v1100
      %v1143 = vsel %vm1139, %v1100, %v1102
      %v1144 = vsel %vm1139, %v1104, %v1106
      %v1145 = vsel %vm1139, %v1106, %v1108
      %v1146 = vsel %vm1139, %v1110, %v1112
      %v1147 = vsel %vm1139, %v1112, %v1114
      %v1148 = vsel %vm1139, %v1116, %v1118
      %v1149 = vsel %vm1139, %v1118, %v1120
      %v1150 = vsel %vm1139, %v1122, %v1124
      %v1151 = vsel %vm1139, %v1124, %v1126
      %v1152 = vsel %vm1139, %v1128, %v1130
      %v1153 = vsel %vm1139, %v1130, %v1132
      %v1154 = vsel %vm1139, %v1134, %v1136
      %v1155 = vsel %vm1139, %v1136, %v1138
      %v1172 = vsel %vm1065, %v1140, 0.0
      %v1173 = vsel %vm1066, %v1141, 0.0
      %v1174 = vsel %vm1065, %v1142, 0.0
      %v1175 = vsel %vm1066, %v1143, 0.0
      %v1176 = vsel %vm1065, %v1144, 0.0
      %v1177 = vsel %vm1066, %v1145, 0.0
      %v1178 = vsel %vm1065, %v1146, 0.0
      %v1179 = vsel %vm1066, %v1147, 0.0
      %v1180 = vsel %vm1065, %v1148, 0.0
      %v1181 = vsel %vm1066, %v1149, 0.0
      %v1182 = vsel %vm1065, %v1150, 0.0
      %v1183 = vsel %vm1066, %v1151, 0.0
      %v1184 = vsel %vm1065, %v1152, 0.0
      %v1185 = vsel %vm1066, %v1153, 0.0
      %v1186 = vsel %vm1065, %v1154, 0.0
      %v1187 = vsel %vm1066, %v1155, 0.0
      %v1188 = vadd.f32 %v1172, 0.0
      %v1189 = vadd.f32 %v1173, 0.0
      %v1190 = vadd.f32 %v1174, 0.0
      %v1191 = vadd.f32 %v1175, 0.0
      %v1192 = vadd.f32 %v1176, 0.0
      %v1193 = vadd.f32 %v1177, 0.0
      %v1194 = vadd.f32 %v1178, 0.0
      %v1195 = vadd.f32 %v1179, 0.0
      %v1196 = vadd.f32 %v1180, 0.0
      %v1197 = vadd.f32 %v1181, 0.0
      %v1198 = vadd.f32 %v1182, 0.0
      %v1199 = vadd.f32 %v1183, 0.0
      %v1200 = vadd.f32 %v1184, 0.0
      %v1201 = vadd.f32 %v1185, 0.0
      %v1202 = vadd.f32 %v1186, 0.0
      %v1203 = vadd.f32 %v1187, 0.0
      %1204 = vset.pattern.permute.xlu0 1
      %1205 = vperm.xlu0 %1204, %v555
      %v1206 = vpop.permute.xlu0 %1205
      %1208 = vset.pattern.permute.xlu0 1
      %1209 = vperm.xlu0 %1208, %v556
      %v1210 = vpop.permute.xlu0 %1209
      %1212 = vset.pattern.permute.xlu0 1
      %1213 = vperm.xlu0 %1212, %v557
      %v1214 = vpop.permute.xlu0 %1213
      %1216 = vset.pattern.permute.xlu0 1
      %1217 = vperm.xlu0 %1216, %v558
      %v1218 = vpop.permute.xlu0 %1217
      %1220 = vset.pattern.permute.xlu0 1
      %1221 = vperm.xlu0 %1220, %v559
      %v1222 = vpop.permute.xlu0 %1221
      %1224 = vset.pattern.permute.xlu0 1
      %1225 = vperm.xlu0 %1224, %v560
      %v1226 = vpop.permute.xlu0 %1225
      %1228 = vset.pattern.permute.xlu0 1
      %1229 = vperm.xlu0 %1228, %v561
      %v1230 = vpop.permute.xlu0 %1229
      %1232 = vset.pattern.permute.xlu0 1
      %1233 = vperm.xlu0 %1232, %v562
      %v1234 = vpop.permute.xlu0 %1233
      %v1236 = vmul.f32 %v1206, %v531
      %v1237 = vmul.f32 %v1206, %v532
      %v1238 = vmul.f32 %v1206, %v533
      %v1239 = vmul.f32 %v1210, %v534
      %v1240 = vmul.f32 %v1210, %v535
      %v1241 = vmul.f32 %v1210, %v536
      %v1242 = vmul.f32 %v1214, %v537
      %v1243 = vmul.f32 %v1214, %v538
      %v1244 = vmul.f32 %v1214, %v539
      %v1245 = vmul.f32 %v1218, %v540
      %v1246 = vmul.f32 %v1218, %v541
      %v1247 = vmul.f32 %v1218, %v542
      %v1248 = vmul.f32 %v1222, %v543
      %v1249 = vmul.f32 %v1222, %v544
      %v1250 = vmul.f32 %v1222, %v545
      %v1251 = vmul.f32 %v1226, %v546
      %v1252 = vmul.f32 %v1226, %v547
      %v1253 = vmul.f32 %v1226, %v548
      %v1254 = vmul.f32 %v1230, %v549
      %v1255 = vmul.f32 %v1230, %v550
      %v1256 = vmul.f32 %v1230, %v551
      %v1257 = vmul.f32 %v1234, %v552
      %v1258 = vmul.f32 %v1234, %v553
      %v1259 = vmul.f32 %v1234, %v554
      %v1260 = vadd.f32 %v1236, 0.0
      %v1261 = vadd.f32 %v1237, 0.0
      %v1262 = vadd.f32 %v1238, 0.0
      %v1263 = vadd.f32 %v1239, 0.0
      %v1264 = vadd.f32 %v1240, 0.0
      %v1265 = vadd.f32 %v1241, 0.0
      %v1266 = vadd.f32 %v1242, 0.0
      %v1267 = vadd.f32 %v1243, 0.0
      %v1268 = vadd.f32 %v1244, 0.0
      %v1269 = vadd.f32 %v1245, 0.0
      %v1270 = vadd.f32 %v1246, 0.0
      %v1271 = vadd.f32 %v1247, 0.0
      %v1272 = vadd.f32 %v1248, 0.0
      %v1273 = vadd.f32 %v1249, 0.0
      %v1274 = vadd.f32 %v1250, 0.0
      %v1275 = vadd.f32 %v1251, 0.0
      %v1276 = vadd.f32 %v1252, 0.0
      %v1277 = vadd.f32 %v1253, 0.0
      %v1278 = vadd.f32 %v1254, 0.0
      %v1279 = vadd.f32 %v1255, 0.0
      %v1280 = vadd.f32 %v1256, 0.0
      %v1281 = vadd.f32 %v1257, 0.0
      %v1282 = vadd.f32 %v1258, 0.0
      %v1283 = vadd.f32 %v1259, 0.0
      %1284 = vset.pattern.permute.xlu0 4
      %1285 = vperm.xlu0 %1284, %v555
      %v1286 = vpop.permute.xlu0 %1285
      %1288 = vset.pattern.permute.xlu0 4
      %1289 = vperm.xlu0 %1288, %v556
      %v1290 = vpop.permute.xlu0 %1289
      %1292 = vset.pattern.permute.xlu0 4
      %1293 = vperm.xlu0 %1292, %v557
      %v1294 = vpop.permute.xlu0 %1293
      %1296 = vset.pattern.permute.xlu0 4
      %1297 = vperm.xlu0 %1296, %v558
      %v1298 = vpop.permute.xlu0 %1297
      %1300 = vset.pattern.permute.xlu0 4
      %1301 = vperm.xlu0 %1300, %v559
      %v1302 = vpop.permute.xlu0 %1301
      %1304 = vset.pattern.permute.xlu0 4
      %1305 = vperm.xlu0 %1304, %v560
      %v1306 = vpop.permute.xlu0 %1305
      %1308 = vset.pattern.permute.xlu0 4
      %1309 = vperm.xlu0 %1308, %v561
      %v1310 = vpop.permute.xlu0 %1309
      %1312 = vset.pattern.permute.xlu0 4
      %1313 = vperm.xlu0 %1312, %v562
      %v1314 = vpop.permute.xlu0 %1313
      %v1316 = vmul.f32 %v1286, %v532
      %v1317 = vmul.f32 %v1286, %v533
      %v1318 = vmul.f32 %v1290, %v535
      %v1319 = vmul.f32 %v1290, %v536
      %v1320 = vmul.f32 %v1294, %v538
      %v1321 = vmul.f32 %v1294, %v539
      %v1322 = vmul.f32 %v1298, %v541
      %v1323 = vmul.f32 %v1298, %v542
      %v1324 = vmul.f32 %v1302, %v544
      %v1325 = vmul.f32 %v1302, %v545
      %v1326 = vmul.f32 %v1306, %v547
      %v1327 = vmul.f32 %v1306, %v548
      %v1328 = vmul.f32 %v1310, %v550
      %v1329 = vmul.f32 %v1310, %v551
      %v1330 = vmul.f32 %v1314, %v553
      %v1331 = vmul.f32 %v1314, %v554
      %1348 = vrot.lane.b32.xlu0 %v1316, 112
      %v1349 = vpop.permute.xlu0 %1348
      %1350 = vrot.lane.b32.xlu0 %v1317, 112
      %v1351 = vpop.permute.xlu0 %1350
      %1352 = vrot.lane.b32.xlu0 %v1318, 112
      %v1353 = vpop.permute.xlu0 %1352
      %1354 = vrot.lane.b32.xlu0 %v1319, 112
      %v1355 = vpop.permute.xlu0 %1354
      %1356 = vrot.lane.b32.xlu0 %v1320, 112
      %v1357 = vpop.permute.xlu0 %1356
      %1358 = vrot.lane.b32.xlu0 %v1321, 112
      %v1359 = vpop.permute.xlu0 %1358
      %1360 = vrot.lane.b32.xlu0 %v1322, 112
      %v1361 = vpop.permute.xlu0 %1360
      %1362 = vrot.lane.b32.xlu0 %v1323, 112
      %v1363 = vpop.permute.xlu0 %1362
      %1364 = vrot.lane.b32.xlu0 %v1324, 112
      %v1365 = vpop.permute.xlu0 %1364
      %1366 = vrot.lane.b32.xlu0 %v1325, 112
      %v1367 = vpop.permute.xlu0 %1366
      %1368 = vrot.lane.b32.xlu0 %v1326, 112
      %v1369 = vpop.permute.xlu0 %1368
      %1370 = vrot.lane.b32.xlu0 %v1327, 112
      %v1371 = vpop.permute.xlu0 %1370
      %1372 = vrot.lane.b32.xlu0 %v1328, 112
      %v1373 = vpop.permute.xlu0 %1372
      %1374 = vrot.lane.b32.xlu0 %v1329, 112
      %v1375 = vpop.permute.xlu0 %1374
      %1376 = vrot.lane.b32.xlu0 %v1330, 112
      %v1377 = vpop.permute.xlu0 %1376
      %1378 = vrot.lane.b32.xlu0 %v1331, 112
      %v1379 = vpop.permute.xlu0 %1378
      %v1380 = vsel %vm779, %v1349, %v1351
      %v1381 = vsel %vm779, %v1353, %v1355
      %v1382 = vsel %vm779, %v1357, %v1359
      %v1383 = vsel %vm779, %v1361, %v1363
      %v1384 = vsel %vm779, %v1365, %v1367
      %v1385 = vsel %vm779, %v1369, %v1371
      %v1386 = vsel %vm779, %v1373, %v1375
      %v1387 = vsel %vm779, %v1377, %v1379
      %v1412 = vadd.f32 %v1260, %v1349
      %v1413 = vadd.f32 %v1261, %v1380
      %v1414 = vadd.f32 %v1262, %v1351
      %v1415 = vadd.f32 %v1263, %v1353
      %v1416 = vadd.f32 %v1264, %v1381
      %v1417 = vadd.f32 %v1265, %v1355
      %v1418 = vadd.f32 %v1266, %v1357
      %v1419 = vadd.f32 %v1267, %v1382
      %v1420 = vadd.f32 %v1268, %v1359
      %v1421 = vadd.f32 %v1269, %v1361
      %v1422 = vadd.f32 %v1270, %v1383
      %v1423 = vadd.f32 %v1271, %v1363
      %v1424 = vadd.f32 %v1272, %v1365
      %v1425 = vadd.f32 %v1273, %v1384
      %v1426 = vadd.f32 %v1274, %v1367
      %v1427 = vadd.f32 %v1275, %v1369
      %v1428 = vadd.f32 %v1276, %v1385
      %v1429 = vadd.f32 %v1277, %v1371
      %v1430 = vadd.f32 %v1278, %v1373
      %v1431 = vadd.f32 %v1279, %v1386
      %v1432 = vadd.f32 %v1280, %v1375
      %v1433 = vadd.f32 %v1281, %v1377
      %v1434 = vadd.f32 %v1282, %v1387
      %v1435 = vadd.f32 %v1283, %v1379
      %1436 = vset.pattern.permute.xlu0 7
      %1437 = vperm.xlu0 %1436, %v555
      %v1438 = vpop.permute.xlu0 %1437
      %1440 = vset.pattern.permute.xlu0 7
      %1441 = vperm.xlu0 %1440, %v556
      %v1442 = vpop.permute.xlu0 %1441
      %1444 = vset.pattern.permute.xlu0 7
      %1445 = vperm.xlu0 %1444, %v557
      %v1446 = vpop.permute.xlu0 %1445
      %1448 = vset.pattern.permute.xlu0 7
      %1449 = vperm.xlu0 %1448, %v558
      %v1450 = vpop.permute.xlu0 %1449
      %1452 = vset.pattern.permute.xlu0 7
      %1453 = vperm.xlu0 %1452, %v559
      %v1454 = vpop.permute.xlu0 %1453
      %1456 = vset.pattern.permute.xlu0 7
      %1457 = vperm.xlu0 %1456, %v560
      %v1458 = vpop.permute.xlu0 %1457
      %1460 = vset.pattern.permute.xlu0 7
      %1461 = vperm.xlu0 %1460, %v561
      %v1462 = vpop.permute.xlu0 %1461
      %1464 = vset.pattern.permute.xlu0 7
      %1465 = vperm.xlu0 %1464, %v562
      %v1466 = vpop.permute.xlu0 %1465
      %v1468 = vmul.f32 %v1438, %v844
      %v1469 = vmul.f32 %v1438, %v845
      %v1470 = vmul.f32 %v1438, %v846
      %v1471 = vmul.f32 %v1442, %v847
      %v1472 = vmul.f32 %v1442, %v848
      %v1473 = vmul.f32 %v1442, %v849
      %v1474 = vmul.f32 %v1446, %v850
      %v1475 = vmul.f32 %v1446, %v851
      %v1476 = vmul.f32 %v1446, %v852
      %v1477 = vmul.f32 %v1450, %v853
      %v1478 = vmul.f32 %v1450, %v854
      %v1479 = vmul.f32 %v1450, %v855
      %v1480 = vmul.f32 %v1454, %v856
      %v1481 = vmul.f32 %v1454, %v857
      %v1482 = vmul.f32 %v1454, %v858
      %v1483 = vmul.f32 %v1458, %v859
      %v1484 = vmul.f32 %v1458, %v860
      %v1485 = vmul.f32 %v1458, %v861
      %v1486 = vmul.f32 %v1462, %v862
      %v1487 = vmul.f32 %v1462, %v863
      %v1488 = vmul.f32 %v1462, %v864
      %v1489 = vmul.f32 %v1466, %v865
      %v1490 = vmul.f32 %v1466, %v866
      %v1491 = vmul.f32 %v1466, %v867
      %1516 = vrot.lane.b32.xlu0 %v1468, 96
      %v1517 = vpop.permute.xlu0 %1516
      %1518 = vrot.lane.b32.xlu0 %v1469, 96
      %v1519 = vpop.permute.xlu0 %1518
      %1520 = vrot.lane.b32.xlu0 %v1470, 96
      %v1521 = vpop.permute.xlu0 %1520
      %1522 = vrot.lane.b32.xlu0 %v1471, 96
      %v1523 = vpop.permute.xlu0 %1522
      %1524 = vrot.lane.b32.xlu0 %v1472, 96
      %v1525 = vpop.permute.xlu0 %1524
      %1526 = vrot.lane.b32.xlu0 %v1473, 96
      %v1527 = vpop.permute.xlu0 %1526
      %1528 = vrot.lane.b32.xlu0 %v1474, 96
      %v1529 = vpop.permute.xlu0 %1528
      %1530 = vrot.lane.b32.xlu0 %v1475, 96
      %v1531 = vpop.permute.xlu0 %1530
      %1532 = vrot.lane.b32.xlu0 %v1476, 96
      %v1533 = vpop.permute.xlu0 %1532
      %1534 = vrot.lane.b32.xlu0 %v1477, 96
      %v1535 = vpop.permute.xlu0 %1534
      %1536 = vrot.lane.b32.xlu0 %v1478, 96
      %v1537 = vpop.permute.xlu0 %1536
      %1538 = vrot.lane.b32.xlu0 %v1479, 96
      %v1539 = vpop.permute.xlu0 %1538
      %1540 = vrot.lane.b32.xlu0 %v1480, 96
      %v1541 = vpop.permute.xlu0 %1540
      %1542 = vrot.lane.b32.xlu0 %v1481, 96
      %v1543 = vpop.permute.xlu0 %1542
      %1544 = vrot.lane.b32.xlu0 %v1482, 96
      %v1545 = vpop.permute.xlu0 %1544
      %1546 = vrot.lane.b32.xlu0 %v1483, 96
      %v1547 = vpop.permute.xlu0 %1546
      %1548 = vrot.lane.b32.xlu0 %v1484, 96
      %v1549 = vpop.permute.xlu0 %1548
      %1550 = vrot.lane.b32.xlu0 %v1485, 96
      %v1551 = vpop.permute.xlu0 %1550
      %1552 = vrot.lane.b32.xlu0 %v1486, 96
      %v1553 = vpop.permute.xlu0 %1552
      %1554 = vrot.lane.b32.xlu0 %v1487, 96
      %v1555 = vpop.permute.xlu0 %1554
      %1556 = vrot.lane.b32.xlu0 %v1488, 96
      %v1557 = vpop.permute.xlu0 %1556
      %1558 = vrot.lane.b32.xlu0 %v1489, 96
      %v1559 = vpop.permute.xlu0 %1558
      %1560 = vrot.lane.b32.xlu0 %v1490, 96
      %v1561 = vpop.permute.xlu0 %1560
      %1562 = vrot.lane.b32.xlu0 %v1491, 96
      %v1563 = vpop.permute.xlu0 %1562
      %v1564 = vsel %vm996, %v1517, %v1519
      %v1565 = vsel %vm996, %v1519, %v1521
      %v1566 = vsel %vm996, %v1523, %v1525
      %v1567 = vsel %vm996, %v1525, %v1527
      %v1568 = vsel %vm996, %v1529, %v1531
      %v1569 = vsel %vm996, %v1531, %v1533
      %v1570 = vsel %vm996, %v1535, %v1537
      %v1571 = vsel %vm996, %v1537, %v1539
      %v1572 = vsel %vm996, %v1541, %v1543
      %v1573 = vsel %vm996, %v1543, %v1545
      %v1574 = vsel %vm996, %v1547, %v1549
      %v1575 = vsel %vm996, %v1549, %v1551
      %v1576 = vsel %vm996, %v1553, %v1555
      %v1577 = vsel %vm996, %v1555, %v1557
      %v1578 = vsel %vm996, %v1559, %v1561
      %v1579 = vsel %vm996, %v1561, %v1563
      %v1604 = vadd.f32 %v1412, %v1517
      %v1605 = vadd.f32 %v1413, %v1564
      %v1606 = vadd.f32 %v1414, %v1565
      %v1607 = vadd.f32 %v1415, %v1523
      %v1608 = vadd.f32 %v1416, %v1566
      %v1609 = vadd.f32 %v1417, %v1567
      %v1610 = vadd.f32 %v1418, %v1529
      %v1611 = vadd.f32 %v1419, %v1568
      %v1612 = vadd.f32 %v1420, %v1569
      %v1613 = vadd.f32 %v1421, %v1535
      %v1614 = vadd.f32 %v1422, %v1570
      %v1615 = vadd.f32 %v1423, %v1571
      %v1616 = vadd.f32 %v1424, %v1541
      %v1617 = vadd.f32 %v1425, %v1572
      %v1618 = vadd.f32 %v1426, %v1573
      %v1619 = vadd.f32 %v1427, %v1547
      %v1620 = vadd.f32 %v1428, %v1574
      %v1621 = vadd.f32 %v1429, %v1575
      %v1622 = vadd.f32 %v1430, %v1553
      %v1623 = vadd.f32 %v1431, %v1576
      %v1624 = vadd.f32 %v1432, %v1577
      %v1625 = vadd.f32 %v1433, %v1559
      %v1626 = vadd.f32 %v1434, %v1578
      %v1627 = vadd.f32 %v1435, %v1579
      %1652 = vrot.lane.b32.xlu0 %v1604, 16
      %v1653 = vpop.permute.xlu0 %1652
      %1654 = vrot.lane.b32.xlu0 %v1605, 16
      %v1655 = vpop.permute.xlu0 %1654
      %1656 = vrot.lane.b32.xlu0 %v1606, 16
      %v1657 = vpop.permute.xlu0 %1656
      %1658 = vrot.lane.b32.xlu0 %v1607, 16
      %v1659 = vpop.permute.xlu0 %1658
      %1660 = vrot.lane.b32.xlu0 %v1608, 16
      %v1661 = vpop.permute.xlu0 %1660
      %1662 = vrot.lane.b32.xlu0 %v1609, 16
      %v1663 = vpop.permute.xlu0 %1662
      %1664 = vrot.lane.b32.xlu0 %v1610, 16
      %v1665 = vpop.permute.xlu0 %1664
      %1666 = vrot.lane.b32.xlu0 %v1611, 16
      %v1667 = vpop.permute.xlu0 %1666
      %1668 = vrot.lane.b32.xlu0 %v1612, 16
      %v1669 = vpop.permute.xlu0 %1668
      %1670 = vrot.lane.b32.xlu0 %v1613, 16
      %v1671 = vpop.permute.xlu0 %1670
      %1672 = vrot.lane.b32.xlu0 %v1614, 16
      %v1673 = vpop.permute.xlu0 %1672
      %1674 = vrot.lane.b32.xlu0 %v1615, 16
      %v1675 = vpop.permute.xlu0 %1674
      %1676 = vrot.lane.b32.xlu0 %v1616, 16
      %v1677 = vpop.permute.xlu0 %1676
      %1678 = vrot.lane.b32.xlu0 %v1617, 16
      %v1679 = vpop.permute.xlu0 %1678
      %1680 = vrot.lane.b32.xlu0 %v1618, 16
      %v1681 = vpop.permute.xlu0 %1680
      %1682 = vrot.lane.b32.xlu0 %v1619, 16
      %v1683 = vpop.permute.xlu0 %1682
      %1684 = vrot.lane.b32.xlu0 %v1620, 16
      %v1685 = vpop.permute.xlu0 %1684
      %1686 = vrot.lane.b32.xlu0 %v1621, 16
      %v1687 = vpop.permute.xlu0 %1686
      %1688 = vrot.lane.b32.xlu0 %v1622, 16
      %v1689 = vpop.permute.xlu0 %1688
      %1690 = vrot.lane.b32.xlu0 %v1623, 16
      %v1691 = vpop.permute.xlu0 %1690
      %1692 = vrot.lane.b32.xlu0 %v1624, 16
      %v1693 = vpop.permute.xlu0 %1692
      %1694 = vrot.lane.b32.xlu0 %v1625, 16
      %v1695 = vpop.permute.xlu0 %1694
      %1696 = vrot.lane.b32.xlu0 %v1626, 16
      %v1697 = vpop.permute.xlu0 %1696
      %1698 = vrot.lane.b32.xlu0 %v1627, 16
      %v1699 = vpop.permute.xlu0 %1698
      %v1700 = vsel %vm339, %v1653, %v1655
      %v1701 = vsel %vm339, %v1655, %v1657
      %v1702 = vsel %vm339, %v1659, %v1661
      %v1703 = vsel %vm339, %v1661, %v1663
      %v1704 = vsel %vm339, %v1665, %v1667
      %v1705 = vsel %vm339, %v1667, %v1669
      %v1706 = vsel %vm339, %v1671, %v1673
      %v1707 = vsel %vm339, %v1673, %v1675
      %v1708 = vsel %vm339, %v1677, %v1679
      %v1709 = vsel %vm339, %v1679, %v1681
      %v1710 = vsel %vm339, %v1683, %v1685
      %v1711 = vsel %vm339, %v1685, %v1687
      %v1712 = vsel %vm339, %v1689, %v1691
      %v1713 = vsel %vm339, %v1691, %v1693
      %v1714 = vsel %vm339, %v1695, %v1697
      %v1715 = vsel %vm339, %v1697, %v1699
      %v1732 = vadd.f32 %v1188, %v1700
      %v1733 = vadd.f32 %v1189, %v1701
      %v1734 = vadd.f32 %v1190, %v1702
      %v1735 = vadd.f32 %v1191, %v1703
      %v1736 = vadd.f32 %v1192, %v1704
      %v1737 = vadd.f32 %v1193, %v1705
      %v1738 = vadd.f32 %v1194, %v1706
      %v1739 = vadd.f32 %v1195, %v1707
      %v1740 = vadd.f32 %v1196, %v1708
      %v1741 = vadd.f32 %v1197, %v1709
      %v1742 = vadd.f32 %v1198, %v1710
      %v1743 = vadd.f32 %v1199, %v1711
      %v1744 = vadd.f32 %v1200, %v1712
      %v1745 = vadd.f32 %v1201, %v1713
      %v1746 = vadd.f32 %v1202, %v1714
      %v1747 = vadd.f32 %v1203, %v1715
      %1748 = vset.pattern.permute.xlu0 2
      %1749 = vperm.xlu0 %1748, %v555
      %v1750 = vpop.permute.xlu0 %1749
      %1752 = vset.pattern.permute.xlu0 2
      %1753 = vperm.xlu0 %1752, %v556
      %v1754 = vpop.permute.xlu0 %1753
      %1756 = vset.pattern.permute.xlu0 2
      %1757 = vperm.xlu0 %1756, %v557
      %v1758 = vpop.permute.xlu0 %1757
      %1760 = vset.pattern.permute.xlu0 2
      %1761 = vperm.xlu0 %1760, %v558
      %v1762 = vpop.permute.xlu0 %1761
      %1764 = vset.pattern.permute.xlu0 2
      %1765 = vperm.xlu0 %1764, %v559
      %v1766 = vpop.permute.xlu0 %1765
      %1768 = vset.pattern.permute.xlu0 2
      %1769 = vperm.xlu0 %1768, %v560
      %v1770 = vpop.permute.xlu0 %1769
      %1772 = vset.pattern.permute.xlu0 2
      %1773 = vperm.xlu0 %1772, %v561
      %v1774 = vpop.permute.xlu0 %1773
      %1776 = vset.pattern.permute.xlu0 2
      %1777 = vperm.xlu0 %1776, %v562
      %v1778 = vpop.permute.xlu0 %1777
      %v1780 = vmul.f32 %v1750, %v531
      %v1781 = vmul.f32 %v1750, %v532
      %v1782 = vmul.f32 %v1750, %v533
      %v1783 = vmul.f32 %v1754, %v534
      %v1784 = vmul.f32 %v1754, %v535
      %v1785 = vmul.f32 %v1754, %v536
      %v1786 = vmul.f32 %v1758, %v537
      %v1787 = vmul.f32 %v1758, %v538
      %v1788 = vmul.f32 %v1758, %v539
      %v1789 = vmul.f32 %v1762, %v540
      %v1790 = vmul.f32 %v1762, %v541
      %v1791 = vmul.f32 %v1762, %v542
      %v1792 = vmul.f32 %v1766, %v543
      %v1793 = vmul.f32 %v1766, %v544
      %v1794 = vmul.f32 %v1766, %v545
      %v1795 = vmul.f32 %v1770, %v546
      %v1796 = vmul.f32 %v1770, %v547
      %v1797 = vmul.f32 %v1770, %v548
      %v1798 = vmul.f32 %v1774, %v549
      %v1799 = vmul.f32 %v1774, %v550
      %v1800 = vmul.f32 %v1774, %v551
      %v1801 = vmul.f32 %v1778, %v552
      %v1802 = vmul.f32 %v1778, %v553
      %v1803 = vmul.f32 %v1778, %v554
      %v1804 = vadd.f32 %v1780, 0.0
      %v1805 = vadd.f32 %v1781, 0.0
      %v1806 = vadd.f32 %v1782, 0.0
      %v1807 = vadd.f32 %v1783, 0.0
      %v1808 = vadd.f32 %v1784, 0.0
      %v1809 = vadd.f32 %v1785, 0.0
      %v1810 = vadd.f32 %v1786, 0.0
      %v1811 = vadd.f32 %v1787, 0.0
      %v1812 = vadd.f32 %v1788, 0.0
      %v1813 = vadd.f32 %v1789, 0.0
      %v1814 = vadd.f32 %v1790, 0.0
      %v1815 = vadd.f32 %v1791, 0.0
      %v1816 = vadd.f32 %v1792, 0.0
      %v1817 = vadd.f32 %v1793, 0.0
      %v1818 = vadd.f32 %v1794, 0.0
      %v1819 = vadd.f32 %v1795, 0.0
      %v1820 = vadd.f32 %v1796, 0.0
      %v1821 = vadd.f32 %v1797, 0.0
      %v1822 = vadd.f32 %v1798, 0.0
      %v1823 = vadd.f32 %v1799, 0.0
      %v1824 = vadd.f32 %v1800, 0.0
      %v1825 = vadd.f32 %v1801, 0.0
      %v1826 = vadd.f32 %v1802, 0.0
      %v1827 = vadd.f32 %v1803, 0.0
      %1828 = vset.pattern.permute.xlu0 5
      %1829 = vperm.xlu0 %1828, %v555
      %v1830 = vpop.permute.xlu0 %1829
      %1832 = vset.pattern.permute.xlu0 5
      %1833 = vperm.xlu0 %1832, %v556
      %v1834 = vpop.permute.xlu0 %1833
      %1836 = vset.pattern.permute.xlu0 5
      %1837 = vperm.xlu0 %1836, %v557
      %v1838 = vpop.permute.xlu0 %1837
      %1840 = vset.pattern.permute.xlu0 5
      %1841 = vperm.xlu0 %1840, %v558
      %v1842 = vpop.permute.xlu0 %1841
      %1844 = vset.pattern.permute.xlu0 5
      %1845 = vperm.xlu0 %1844, %v559
      %v1846 = vpop.permute.xlu0 %1845
      %1848 = vset.pattern.permute.xlu0 5
      %1849 = vperm.xlu0 %1848, %v560
      %v1850 = vpop.permute.xlu0 %1849
      %1852 = vset.pattern.permute.xlu0 5
      %1853 = vperm.xlu0 %1852, %v561
      %v1854 = vpop.permute.xlu0 %1853
      %1856 = vset.pattern.permute.xlu0 5
      %1857 = vperm.xlu0 %1856, %v562
      %v1858 = vpop.permute.xlu0 %1857
      %v1860 = vmul.f32 %v1830, %v844
      %v1861 = vmul.f32 %v1830, %v845
      %v1862 = vmul.f32 %v1830, %v846
      %v1863 = vmul.f32 %v1834, %v847
      %v1864 = vmul.f32 %v1834, %v848
      %v1865 = vmul.f32 %v1834, %v849
      %v1866 = vmul.f32 %v1838, %v850
      %v1867 = vmul.f32 %v1838, %v851
      %v1868 = vmul.f32 %v1838, %v852
      %v1869 = vmul.f32 %v1842, %v853
      %v1870 = vmul.f32 %v1842, %v854
      %v1871 = vmul.f32 %v1842, %v855
      %v1872 = vmul.f32 %v1846, %v856
      %v1873 = vmul.f32 %v1846, %v857
      %v1874 = vmul.f32 %v1846, %v858
      %v1875 = vmul.f32 %v1850, %v859
      %v1876 = vmul.f32 %v1850, %v860
      %v1877 = vmul.f32 %v1850, %v861
      %v1878 = vmul.f32 %v1854, %v862
      %v1879 = vmul.f32 %v1854, %v863
      %v1880 = vmul.f32 %v1854, %v864
      %v1881 = vmul.f32 %v1858, %v865
      %v1882 = vmul.f32 %v1858, %v866
      %v1883 = vmul.f32 %v1858, %v867
      %1908 = vrot.lane.b32.xlu0 %v1860, 112
      %v1909 = vpop.permute.xlu0 %1908
      %1910 = vrot.lane.b32.xlu0 %v1861, 112
      %v1911 = vpop.permute.xlu0 %1910
      %1912 = vrot.lane.b32.xlu0 %v1862, 112
      %v1913 = vpop.permute.xlu0 %1912
      %1914 = vrot.lane.b32.xlu0 %v1863, 112
      %v1915 = vpop.permute.xlu0 %1914
      %1916 = vrot.lane.b32.xlu0 %v1864, 112
      %v1917 = vpop.permute.xlu0 %1916
      %1918 = vrot.lane.b32.xlu0 %v1865, 112
      %v1919 = vpop.permute.xlu0 %1918
      %1920 = vrot.lane.b32.xlu0 %v1866, 112
      %v1921 = vpop.permute.xlu0 %1920
      %1922 = vrot.lane.b32.xlu0 %v1867, 112
      %v1923 = vpop.permute.xlu0 %1922
      %1924 = vrot.lane.b32.xlu0 %v1868, 112
      %v1925 = vpop.permute.xlu0 %1924
      %1926 = vrot.lane.b32.xlu0 %v1869, 112
      %v1927 = vpop.permute.xlu0 %1926
      %1928 = vrot.lane.b32.xlu0 %v1870, 112
      %v1929 = vpop.permute.xlu0 %1928
      %1930 = vrot.lane.b32.xlu0 %v1871, 112
      %v1931 = vpop.permute.xlu0 %1930
      %1932 = vrot.lane.b32.xlu0 %v1872, 112
      %v1933 = vpop.permute.xlu0 %1932
      %1934 = vrot.lane.b32.xlu0 %v1873, 112
      %v1935 = vpop.permute.xlu0 %1934
      %1936 = vrot.lane.b32.xlu0 %v1874, 112
      %v1937 = vpop.permute.xlu0 %1936
      %1938 = vrot.lane.b32.xlu0 %v1875, 112
      %v1939 = vpop.permute.xlu0 %1938
      %1940 = vrot.lane.b32.xlu0 %v1876, 112
      %v1941 = vpop.permute.xlu0 %1940
      %1942 = vrot.lane.b32.xlu0 %v1877, 112
      %v1943 = vpop.permute.xlu0 %1942
      %1944 = vrot.lane.b32.xlu0 %v1878, 112
      %v1945 = vpop.permute.xlu0 %1944
      %1946 = vrot.lane.b32.xlu0 %v1879, 112
      %v1947 = vpop.permute.xlu0 %1946
      %1948 = vrot.lane.b32.xlu0 %v1880, 112
      %v1949 = vpop.permute.xlu0 %1948
      %1950 = vrot.lane.b32.xlu0 %v1881, 112
      %v1951 = vpop.permute.xlu0 %1950
      %1952 = vrot.lane.b32.xlu0 %v1882, 112
      %v1953 = vpop.permute.xlu0 %1952
      %1954 = vrot.lane.b32.xlu0 %v1883, 112
      %v1955 = vpop.permute.xlu0 %1954
      %v1956 = vsel %vm779, %v1909, %v1911
      %v1957 = vsel %vm779, %v1911, %v1913
      %v1958 = vsel %vm779, %v1915, %v1917
      %v1959 = vsel %vm779, %v1917, %v1919
      %v1960 = vsel %vm779, %v1921, %v1923
      %v1961 = vsel %vm779, %v1923, %v1925
      %v1962 = vsel %vm779, %v1927, %v1929
      %v1963 = vsel %vm779, %v1929, %v1931
      %v1964 = vsel %vm779, %v1933, %v1935
      %v1965 = vsel %vm779, %v1935, %v1937
      %v1966 = vsel %vm779, %v1939, %v1941
      %v1967 = vsel %vm779, %v1941, %v1943
      %v1968 = vsel %vm779, %v1945, %v1947
      %v1969 = vsel %vm779, %v1947, %v1949
      %v1970 = vsel %vm779, %v1951, %v1953
      %v1971 = vsel %vm779, %v1953, %v1955
      %v1996 = vadd.f32 %v1804, %v1909
      %v1997 = vadd.f32 %v1805, %v1956
      %v1998 = vadd.f32 %v1806, %v1957
      %v1999 = vadd.f32 %v1807, %v1915
      %v2000 = vadd.f32 %v1808, %v1958
      %v2001 = vadd.f32 %v1809, %v1959
      %v2002 = vadd.f32 %v1810, %v1921
      %v2003 = vadd.f32 %v1811, %v1960
      %v2004 = vadd.f32 %v1812, %v1961
      %v2005 = vadd.f32 %v1813, %v1927
      %v2006 = vadd.f32 %v1814, %v1962
      %v2007 = vadd.f32 %v1815, %v1963
      %v2008 = vadd.f32 %v1816, %v1933
      %v2009 = vadd.f32 %v1817, %v1964
      %v2010 = vadd.f32 %v1818, %v1965
      %v2011 = vadd.f32 %v1819, %v1939
      %v2012 = vadd.f32 %v1820, %v1966
      %v2013 = vadd.f32 %v1821, %v1967
      %v2014 = vadd.f32 %v1822, %v1945
      %v2015 = vadd.f32 %v1823, %v1968
      %v2016 = vadd.f32 %v1824, %v1969
      %v2017 = vadd.f32 %v1825, %v1951
      %v2018 = vadd.f32 %v1826, %v1970
      %v2019 = vadd.f32 %v1827, %v1971
      %2020 = vset.pattern.permute.xlu0 8
      %2021 = vperm.xlu0 %2020, %v555
      %v2022 = vpop.permute.xlu0 %2021
      %2024 = vset.pattern.permute.xlu0 8
      %2025 = vperm.xlu0 %2024, %v556
      %v2026 = vpop.permute.xlu0 %2025
      %2028 = vset.pattern.permute.xlu0 8
      %2029 = vperm.xlu0 %2028, %v557
      %v2030 = vpop.permute.xlu0 %2029
      %2032 = vset.pattern.permute.xlu0 8
      %2033 = vperm.xlu0 %2032, %v558
      %v2034 = vpop.permute.xlu0 %2033
      %2036 = vset.pattern.permute.xlu0 8
      %2037 = vperm.xlu0 %2036, %v559
      %v2038 = vpop.permute.xlu0 %2037
      %2040 = vset.pattern.permute.xlu0 8
      %2041 = vperm.xlu0 %2040, %v560
      %v2042 = vpop.permute.xlu0 %2041
      %2044 = vset.pattern.permute.xlu0 8
      %2045 = vperm.xlu0 %2044, %v561
      %v2046 = vpop.permute.xlu0 %2045
      %2048 = vset.pattern.permute.xlu0 8
      %2049 = vperm.xlu0 %2048, %v562
      %v2050 = vpop.permute.xlu0 %2049
      %v2052 = vmul.f32 %v2022, %v844
      %v2053 = vmul.f32 %v2022, %v845
      %v2054 = vmul.f32 %v2022, %v846
      %v2055 = vmul.f32 %v2026, %v847
      %v2056 = vmul.f32 %v2026, %v848
      %v2057 = vmul.f32 %v2026, %v849
      %v2058 = vmul.f32 %v2030, %v850
      %v2059 = vmul.f32 %v2030, %v851
      %v2060 = vmul.f32 %v2030, %v852
      %v2061 = vmul.f32 %v2034, %v853
      %v2062 = vmul.f32 %v2034, %v854
      %v2063 = vmul.f32 %v2034, %v855
      %v2064 = vmul.f32 %v2038, %v856
      %v2065 = vmul.f32 %v2038, %v857
      %v2066 = vmul.f32 %v2038, %v858
      %v2067 = vmul.f32 %v2042, %v859
      %v2068 = vmul.f32 %v2042, %v860
      %v2069 = vmul.f32 %v2042, %v861
      %v2070 = vmul.f32 %v2046, %v862
      %v2071 = vmul.f32 %v2046, %v863
      %v2072 = vmul.f32 %v2046, %v864
      %v2073 = vmul.f32 %v2050, %v865
      %v2074 = vmul.f32 %v2050, %v866
      %v2075 = vmul.f32 %v2050, %v867
      %2100 = vrot.lane.b32.xlu0 %v2052, 96
      %v2101 = vpop.permute.xlu0 %2100
      %2102 = vrot.lane.b32.xlu0 %v2053, 96
      %v2103 = vpop.permute.xlu0 %2102
      %2104 = vrot.lane.b32.xlu0 %v2054, 96
      %v2105 = vpop.permute.xlu0 %2104
      %2106 = vrot.lane.b32.xlu0 %v2055, 96
      %v2107 = vpop.permute.xlu0 %2106
      %2108 = vrot.lane.b32.xlu0 %v2056, 96
      %v2109 = vpop.permute.xlu0 %2108
      %2110 = vrot.lane.b32.xlu0 %v2057, 96
      %v2111 = vpop.permute.xlu0 %2110
      %2112 = vrot.lane.b32.xlu0 %v2058, 96
      %v2113 = vpop.permute.xlu0 %2112
      %2114 = vrot.lane.b32.xlu0 %v2059, 96
      %v2115 = vpop.permute.xlu0 %2114
      %2116 = vrot.lane.b32.xlu0 %v2060, 96
      %v2117 = vpop.permute.xlu0 %2116
      %2118 = vrot.lane.b32.xlu0 %v2061, 96
      %v2119 = vpop.permute.xlu0 %2118
      %2120 = vrot.lane.b32.xlu0 %v2062, 96
      %v2121 = vpop.permute.xlu0 %2120
      %2122 = vrot.lane.b32.xlu0 %v2063, 96
      %v2123 = vpop.permute.xlu0 %2122
      %2124 = vrot.lane.b32.xlu0 %v2064, 96
      %v2125 = vpop.permute.xlu0 %2124
      %2126 = vrot.lane.b32.xlu0 %v2065, 96
      %v2127 = vpop.permute.xlu0 %2126
      %2128 = vrot.lane.b32.xlu0 %v2066, 96
      %v2129 = vpop.permute.xlu0 %2128
      %2130 = vrot.lane.b32.xlu0 %v2067, 96
      %v2131 = vpop.permute.xlu0 %2130
      %2132 = vrot.lane.b32.xlu0 %v2068, 96
      %v2133 = vpop.permute.xlu0 %2132
      %2134 = vrot.lane.b32.xlu0 %v2069, 96
      %v2135 = vpop.permute.xlu0 %2134
      %2136 = vrot.lane.b32.xlu0 %v2070, 96
      %v2137 = vpop.permute.xlu0 %2136
      %2138 = vrot.lane.b32.xlu0 %v2071, 96
      %v2139 = vpop.permute.xlu0 %2138
      %2140 = vrot.lane.b32.xlu0 %v2072, 96
      %v2141 = vpop.permute.xlu0 %2140
      %2142 = vrot.lane.b32.xlu0 %v2073, 96
      %v2143 = vpop.permute.xlu0 %2142
      %2144 = vrot.lane.b32.xlu0 %v2074, 96
      %v2145 = vpop.permute.xlu0 %2144
      %2146 = vrot.lane.b32.xlu0 %v2075, 96
      %v2147 = vpop.permute.xlu0 %2146
      %v2148 = vsel %vm996, %v2101, %v2103
      %v2149 = vsel %vm996, %v2103, %v2105
      %v2150 = vsel %vm996, %v2107, %v2109
      %v2151 = vsel %vm996, %v2109, %v2111
      %v2152 = vsel %vm996, %v2113, %v2115
      %v2153 = vsel %vm996, %v2115, %v2117
      %v2154 = vsel %vm996, %v2119, %v2121
      %v2155 = vsel %vm996, %v2121, %v2123
      %v2156 = vsel %vm996, %v2125, %v2127
      %v2157 = vsel %vm996, %v2127, %v2129
      %v2158 = vsel %vm996, %v2131, %v2133
      %v2159 = vsel %vm996, %v2133, %v2135
      %v2160 = vsel %vm996, %v2137, %v2139
      %v2161 = vsel %vm996, %v2139, %v2141
      %v2162 = vsel %vm996, %v2143, %v2145
      %v2163 = vsel %vm996, %v2145, %v2147
      %v2188 = vadd.f32 %v1996, %v2101
      %v2189 = vadd.f32 %v1997, %v2148
      %v2190 = vadd.f32 %v1998, %v2149
      %v2191 = vadd.f32 %v1999, %v2107
      %v2192 = vadd.f32 %v2000, %v2150
      %v2193 = vadd.f32 %v2001, %v2151
      %v2194 = vadd.f32 %v2002, %v2113
      %v2195 = vadd.f32 %v2003, %v2152
      %v2196 = vadd.f32 %v2004, %v2153
      %v2197 = vadd.f32 %v2005, %v2119
      %v2198 = vadd.f32 %v2006, %v2154
      %v2199 = vadd.f32 %v2007, %v2155
      %v2200 = vadd.f32 %v2008, %v2125
      %v2201 = vadd.f32 %v2009, %v2156
      %v2202 = vadd.f32 %v2010, %v2157
      %v2203 = vadd.f32 %v2011, %v2131
      %v2204 = vadd.f32 %v2012, %v2158
      %v2205 = vadd.f32 %v2013, %v2159
      %v2206 = vadd.f32 %v2014, %v2137
      %v2207 = vadd.f32 %v2015, %v2160
      %v2208 = vadd.f32 %v2016, %v2161
      %v2209 = vadd.f32 %v2017, %v2143
      %v2210 = vadd.f32 %v2018, %v2162
      %v2211 = vadd.f32 %v2019, %v2163
      %vm2212 = vcmp.lt.s32.totalorder %v529, 15
      %vm2213 = vcmp.lt.s32.totalorder %v530, 15
      %v2214 = vsel %vm2212, 1, 0
      %v2215 = vsel %vm2213, 1, 0
      %vm2216 = vcmp.eq.s32.totalorder %v2214, 1
      %vm2217 = vcmp.eq.s32.totalorder %v2215, 1
      %2242 = vrot.lane.b32.xlu0 %v2188, 15
      %v2243 = vpop.permute.xlu0 %2242
      %2244 = vrot.lane.b32.xlu0 %v2189, 15
      %v2245 = vpop.permute.xlu0 %2244
      %2246 = vrot.lane.b32.xlu0 %v2190, 15
      %v2247 = vpop.permute.xlu0 %2246
      %2248 = vrot.lane.b32.xlu0 %v2191, 15
      %v2249 = vpop.permute.xlu0 %2248
      %2250 = vrot.lane.b32.xlu0 %v2192, 15
      %v2251 = vpop.permute.xlu0 %2250
      %2252 = vrot.lane.b32.xlu0 %v2193, 15
      %v2253 = vpop.permute.xlu0 %2252
      %2254 = vrot.lane.b32.xlu0 %v2194, 15
      %v2255 = vpop.permute.xlu0 %2254
      %2256 = vrot.lane.b32.xlu0 %v2195, 15
      %v2257 = vpop.permute.xlu0 %2256
      %2258 = vrot.lane.b32.xlu0 %v2196, 15
      %v2259 = vpop.permute.xlu0 %2258
      %2260 = vrot.lane.b32.xlu0 %v2197, 15
      %v2261 = vpop.permute.xlu0 %2260
      %2262 = vrot.lane.b32.xlu0 %v2198, 15
      %v2263 = vpop.permute.xlu0 %2262
      %2264 = vrot.lane.b32.xlu0 %v2199, 15
      %v2265 = vpop.permute.xlu0 %2264
      %2266 = vrot.lane.b32.xlu0 %v2200, 15
      %v2267 = vpop.permute.xlu0 %2266
      %2268 = vrot.lane.b32.xlu0 %v2201, 15
      %v2269 = vpop.permute.xlu0 %2268
      %2270 = vrot.lane.b32.xlu0 %v2202, 15
      %v2271 = vpop.permute.xlu0 %2270
      %2272 = vrot.lane.b32.xlu0 %v2203, 15
      %v2273 = vpop.permute.xlu0 %2272
      %2274 = vrot.lane.b32.xlu0 %v2204, 15
      %v2275 = vpop.permute.xlu0 %2274
      %2276 = vrot.lane.b32.xlu0 %v2205, 15
      %v2277 = vpop.permute.xlu0 %2276
      %2278 = vrot.lane.b32.xlu0 %v2206, 15
      %v2279 = vpop.permute.xlu0 %2278
      %2280 = vrot.lane.b32.xlu0 %v2207, 15
      %v2281 = vpop.permute.xlu0 %2280
      %2282 = vrot.lane.b32.xlu0 %v2208, 15
      %v2283 = vpop.permute.xlu0 %2282
      %2284 = vrot.lane.b32.xlu0 %v2209, 15
      %v2285 = vpop.permute.xlu0 %2284
      %2286 = vrot.lane.b32.xlu0 %v2210, 15
      %v2287 = vpop.permute.xlu0 %2286
      %2288 = vrot.lane.b32.xlu0 %v2211, 15
      %v2289 = vpop.permute.xlu0 %2288
      %vm2290 = vcmask 121856
      %v2291 = vsel %vm2290, %v2243, %v2245
      %v2292 = vsel %vm2290, %v2245, %v2247
      %v2293 = vsel %vm2290, %v2249, %v2251
      %v2294 = vsel %vm2290, %v2251, %v2253
      %v2295 = vsel %vm2290, %v2255, %v2257
      %v2296 = vsel %vm2290, %v2257, %v2259
      %v2297 = vsel %vm2290, %v2261, %v2263
      %v2298 = vsel %vm2290, %v2263, %v2265
      %v2299 = vsel %vm2290, %v2267, %v2269
      %v2300 = vsel %vm2290, %v2269, %v2271
      %v2301 = vsel %vm2290, %v2273, %v2275
      %v2302 = vsel %vm2290, %v2275, %v2277
      %v2303 = vsel %vm2290, %v2279, %v2281
      %v2304 = vsel %vm2290, %v2281, %v2283
      %v2305 = vsel %vm2290, %v2285, %v2287
      %v2306 = vsel %vm2290, %v2287, %v2289
      %v2323 = vsel %vm2216, %v2291, 0.0
      %v2324 = vsel %vm2217, %v2292, 0.0
      %v2325 = vsel %vm2216, %v2293, 0.0
      %v2326 = vsel %vm2217, %v2294, 0.0
      %v2327 = vsel %vm2216, %v2295, 0.0
      %v2328 = vsel %vm2217, %v2296, 0.0
      %v2329 = vsel %vm2216, %v2297, 0.0
      %v2330 = vsel %vm2217, %v2298, 0.0
      %v2331 = vsel %vm2216, %v2299, 0.0
      %v2332 = vsel %vm2217, %v2300, 0.0
      %v2333 = vsel %vm2216, %v2301, 0.0
      %v2334 = vsel %vm2217, %v2302, 0.0
      %v2335 = vsel %vm2216, %v2303, 0.0
      %v2336 = vsel %vm2217, %v2304, 0.0
      %v2337 = vsel %vm2216, %v2305, 0.0
      %v2338 = vsel %vm2217, %v2306, 0.0
      %v2339 = vadd.f32 %v1732, %v2323
      %v2340 = vadd.f32 %v1733, %v2324
      %v2341 = vadd.f32 %v1734, %v2325
      %v2342 = vadd.f32 %v1735, %v2326
      %v2343 = vadd.f32 %v1736, %v2327
      %v2344 = vadd.f32 %v1737, %v2328
      %v2345 = vadd.f32 %v1738, %v2329
      %v2346 = vadd.f32 %v1739, %v2330
      %v2347 = vadd.f32 %v1740, %v2331
      %v2348 = vadd.f32 %v1741, %v2332
      %v2349 = vadd.f32 %v1742, %v2333
      %v2350 = vadd.f32 %v1743, %v2334
      %v2351 = vadd.f32 %v1744, %v2335
      %v2352 = vadd.f32 %v1745, %v2336
      %v2353 = vadd.f32 %v1746, %v2337
      %v2354 = vadd.f32 %v1747, %v2338
      %v2355 = vld [vmem:[%s4] sm:$0xff]
      %v2356 = vld [vmem:[%s4 + $0x8] sm:$0xff]
      %v2357 = vld [vmem:[%s4 + $0x10] sm:$0xff]
      %v2358 = vld [vmem:[%s4 + $0x18] sm:$0xff]
      %v2359 = vld [vmem:[%s4 + $0x20] sm:$0xff]
      %v2360 = vld [vmem:[%s4 + $0x28] sm:$0xff]
      %v2361 = vld [vmem:[%s4 + $0x30] sm:$0xff]
      %v2362 = vld [vmem:[%s4 + $0x38] sm:$0xff]
      %2364 = vset.pattern.permute.xlu0 0
      %2365 = vperm.xlu0 %2364, %v2355
      %v2366 = vpop.permute.xlu0 %2365
      %2369 = vset.pattern.permute.xlu0 0
      %2370 = vperm.xlu0 %2369, %v2356
      %v2371 = vpop.permute.xlu0 %2370
      %2374 = vset.pattern.permute.xlu0 0
      %2375 = vperm.xlu0 %2374, %v2357
      %v2376 = vpop.permute.xlu0 %2375
      %2379 = vset.pattern.permute.xlu0 0
      %2380 = vperm.xlu0 %2379, %v2358
      %v2381 = vpop.permute.xlu0 %2380
      %2384 = vset.pattern.permute.xlu0 0
      %2385 = vperm.xlu0 %2384, %v2359
      %v2386 = vpop.permute.xlu0 %2385
      %2389 = vset.pattern.permute.xlu0 0
      %2390 = vperm.xlu0 %2389, %v2360
      %v2391 = vpop.permute.xlu0 %2390
      %2394 = vset.pattern.permute.xlu0 0
      %2395 = vperm.xlu0 %2394, %v2361
      %v2396 = vpop.permute.xlu0 %2395
      %2399 = vset.pattern.permute.xlu0 0
      %2400 = vperm.xlu0 %2399, %v2362
      %v2401 = vpop.permute.xlu0 %2400
      %v2403 = vadd.f32 %v2339, %v2366
      %v2404 = vadd.f32 %v2340, %v2366
      %v2405 = vadd.f32 %v2341, %v2371
      %v2406 = vadd.f32 %v2342, %v2371
      %v2407 = vadd.f32 %v2343, %v2376
      %v2408 = vadd.f32 %v2344, %v2376
      %v2409 = vadd.f32 %v2345, %v2381
      %v2410 = vadd.f32 %v2346, %v2381
      %v2411 = vadd.f32 %v2347, %v2386
      %v2412 = vadd.f32 %v2348, %v2386
      %v2413 = vadd.f32 %v2349, %v2391
      %v2414 = vadd.f32 %v2350, %v2391
      %v2415 = vadd.f32 %v2351, %v2396
      %v2416 = vadd.f32 %v2352, %v2396
      %v2417 = vadd.f32 %v2353, %v2401
      %v2418 = vadd.f32 %v2354, %v2401
      %v2419 = vmax.f32 %v2403, 0.0
      %v2420 = vmax.f32 %v2404, 0.0
      %v2421 = vmax.f32 %v2405, 0.0
      %v2422 = vmax.f32 %v2406, 0.0
      %v2423 = vmax.f32 %v2407, 0.0
      %v2424 = vmax.f32 %v2408, 0.0
      %v2425 = vmax.f32 %v2409, 0.0
      %v2426 = vmax.f32 %v2410, 0.0
      %v2427 = vmax.f32 %v2411, 0.0
      %v2428 = vmax.f32 %v2412, 0.0
      %v2429 = vmax.f32 %v2413, 0.0
      %v2430 = vmax.f32 %v2414, 0.0
      %v2431 = vmax.f32 %v2415, 0.0
      %v2432 = vmax.f32 %v2416, 0.0
      %v2433 = vmax.f32 %v2417, 0.0
      %v2434 = vmax.f32 %v2418, 0.0
      %v2435 = vld [vmem:[%s5] sm:$0xff]
      %v2436 = vld [vmem:[%s5 + $0x8] sm:$0xff]
      %v2437 = vld [vmem:[%s6] sm:$0xff]
      %v2438 = vld [vmem:[%s6 + $0x8] sm:$0xff]
      %2440 = vset.pattern.permute.xlu0 0
      %2441 = vperm.xlu0 %2440, %v2437
      %v2442 = vpop.permute.xlu0 %2441
      %2445 = vset.pattern.permute.xlu0 0
      %2446 = vperm.xlu0 %2445, %v2438
      %v2447 = vpop.permute.xlu0 %2446
      %vm2449 = vcmask 523264
      %v2451 = vsel %vm2449, %v2435, 0
      %v2454 = vsel %vm2449, %v2436, 0
      %2456 = vmatprep.subr.mxu0 0.0
      %2457 = vmatpush1.msra.mxu0 0.0
      %2458 = vmatprep.subr.mxu0 0.0
      %2459 = vmatpush1.msra.mxu0 0.0
      %2460 = vmatprep.subr.mxu0 0.0
      %2461 = vmatpush1.msra.mxu0 0.0
      %2462 = vmatprep.subr.mxu0 0.0
      %2463 = vmatpush1.msra.mxu0 0.0
      %2464 = vmatprep.subr.mxu0 0.0
      %2465 = vmatpush1.msra.mxu0 0.0
      %2466 = vmatprep.subr.mxu0 0.0
      %2467 = vmatpush1.msra.mxu0 0.0
      %2468 = vmatprep.subr.mxu0 0.0
      %2469 = vmatpush1.msra.mxu0 0.0
      %2470 = vmatprep.subr.mxu0 0.0
      %2471 = vmatpush1.msra.mxu0 0.0
      %2472 = vmatprep.subr.mxu0 %v2434
      %2473 = vmatpush1.msra.mxu0 %v2433
      %2474 = vmatprep.subr.mxu0 %v2432
      %2475 = vmatpush1.msra.mxu0 %v2431
      %2476 = vmatprep.subr.mxu0 %v2430
      %2477 = vmatpush1.msra.mxu0 %v2429
      %2478 = vmatprep.subr.mxu0 %v2428
      %2479 = vmatpush1.msra.mxu0 %v2427
      %2480 = vmatprep.subr.mxu0 %v2426
      %2481 = vmatpush1.msra.mxu0 %v2425
      %2482 = vmatprep.subr.mxu0 %v2424
      %2483 = vmatpush1.msra.mxu0 %v2423
      %2484 = vmatprep.subr.mxu0 %v2422
      %2485 = vmatpush1.msra.mxu0 %v2421
      %2486 = vmatprep.subr.mxu0 %v2420
      %2487 = vmatpush1.msra.mxu0 %v2419
      %2488 = vmatprep.subr.mxu0 0.0
      %2489 = vmatpush2.msra.mxu0 0.0
      %2490 = vmatprep.subr.mxu0 0.0
      %2491 = vmatpush2.msra.mxu0 0.0
      %2492 = vmatprep.subr.mxu0 0.0
      %2493 = vmatpush2.msra.mxu0 0.0
      %2494 = vmatprep.subr.mxu0 0.0
      %2495 = vmatpush2.msra.mxu0 0.0
      %2496 = vmatprep.subr.mxu0 0.0
      %2497 = vmatpush2.msra.mxu0 0.0
      %2498 = vmatprep.subr.mxu0 0.0
      %2499 = vmatpush2.msra.mxu0 0.0
      %2500 = vmatprep.subr.mxu0 0.0
      %2501 = vmatpush2.msra.mxu0 0.0
      %2502 = vmatprep.subr.mxu0 0.0
      %2503 = vmatpush2.msra.mxu0 0.0
      %2504 = vmatprep.subr.mxu0 0.0
      %2505 = vmatpush2.msra.mxu0 0.0
      %2506 = vmatprep.subr.mxu0 0.0
      %2507 = vmatpush2.msra.mxu0 0.0
      %2508 = vmatprep.subr.mxu0 0.0
      %2509 = vmatpush2.msra.mxu0 0.0
      %2510 = vmatprep.subr.mxu0 0.0
      %2511 = vmatpush2.msra.mxu0 0.0
      %2512 = vmatprep.subr.mxu0 0.0
      %2513 = vmatpush2.msra.mxu0 0.0
      %2514 = vmatprep.subr.mxu0 0.0
      %2515 = vmatpush2.msra.mxu0 0.0
      %2516 = vmatprep.subr.mxu0 0.0
      %2517 = vmatpush2.msra.mxu0 0.0
      %2518 = vmatprep.subr.mxu0 0.0
      %2519 = vmatpush2.msra.mxu0 0.0
      %2520 = vmatprep.mubr.f32.mxu0 0.0
      %2521 = vmatmul.mubr.f32.gmra.mxu0 %v2451
      %v2522 = vpop.f32.mrf.mxu0
      %v2523 = vadd.f32 %v2442, %v2522
      %v2524 = vpop.f32.mrf.mxu0
      %v2525 = vadd.f32 %v2442, %v2524
      %2526 = vmatprep.mubr.f32.mxu0 0.0
      %2527 = vmatmul.mubr.f32.gmra.mxu0 %v2454
      %v2528 = vpop.f32.mrf.mxu0
      %v2529 = vadd.f32 %v2447, %v2528
      %v2530 = vpop.f32.mrf.mxu0
      %v2531 = vadd.f32 %v2447, %v2530
      %2532 = vdwg.mxu0
      %v2533 = vadd.f32 %v2523, %v279
      %v2534 = vadd.f32 %v2525, %v280
      %v2535 = vadd.f32 %v2529, %v281
      %v2536 = vadd.f32 %v2531, %v282
      %2537 = vst [vmem:[%s278] sm:$0xff] %v2533
      %2538 = vst [vmem:[%s278 + $0x8] sm:$0xff] %v2534
      %2539 = vst [vmem:[%s278 + $0x10] sm:$0xff] %v2535
      %2540 = vst [vmem:[%s278 + $0x18] sm:$0xff] %v2536
      %p2541 = scmp.lt.s32.totalorder %s18, 1
      %s2542 = scalar_select %p2541, %s18, 1
      %s2543 = smul.addr %s2542, 4
      %s2544 = smul.addr %s2543, 8
      %s2545 = scalar_lea.vmem %s7, %s2544
      // Predicated region
      $region49: #{uib_forward_pallas.1} parent=47 // pred_check
        %p2546 = pneg %p188
      $region50: #{uib_forward_pallas.1} parent=47 // pred_check_branch
        %2548 = sbr.rel (%p2546) target = $region52
      $region51: #{uib_forward_pallas.1} parent=47 // pred_region
        _
      $region52: #{uib_forward_pallas.1} parent=47 // pred_fallthru
        _
    $region48: #{uib_forward_pallas.1} parent=5 // pred_fallthru
      _
    %p2549 = scmp.le.s32.totalorder 2, %s13
    // Predicated region
    $region53: #{uib_forward_pallas.1} parent=5 // pred_check
      %p2550 = pneg %p2549
    $region54: #{uib_forward_pallas.1} parent=5 // pred_check_branch
      %2552 = sbr.rel (%p2550) target = $region56
    $region55: #{uib_forward_pallas.1} parent=5 // pred_region
      %s2553 = ssub.s32 %s13, 2
      // Predicated region
      $region57: #{uib_forward_pallas.1} parent=55 // pred_check
        %p2554 = pneg %p194
      $region58: #{uib_forward_pallas.1} parent=55 // pred_check_branch
        %2556 = sbr.rel (%p2554) target = $region60
      $region59: #{uib_forward_pallas.1} parent=55 // pred_region
        %p2557 = scmp.lt.s32.totalorder %s19, 1
        %s2558 = scalar_select %p2557, %s19, 1
        %s2559 = smul.addr %s2558, 4
        %s2560 = smul.addr %s2559, 8
        %s2561 = scalar_lea.vmem %s7, %s2560
      $region60: #{uib_forward_pallas.1} parent=55 // pred_fallthru
        _
    $region56: #{uib_forward_pallas.1} parent=5 // pred_fallthru
      _
  $region6: #{uib_forward_pallas.1} parent=0 // loop_footer
    %s17 = sadd.s32 1, %s13
  $region7: #{uib_forward_pallas.1} parent=0 // loop_footer_branch
    %12 = sbr.rel target = $region3
  $region8: #{uib_forward_pallas.1} parent=0 // loop_exit
    _

</llo_original>
